<compile_context>
chip_gen: v7x
topology: tpu7x:2x2x1
jax: 0.10.0
libtpu: 0.0.40
codegen_flags: <defaults>
</compile_context>

<pallas_src>
import functools

import jax
import jax.numpy as jnp
import numpy as np
from jax.experimental import pallas as pl
from jax.experimental.pallas import tpu as pltpu


# ----------------------------- kernels --------------------------------------


def _conv_act_kernel(x_ref, w_ref, b_ref, slope_ref, o_ref, slab_ref, acc_ref, *,
                     kh, kw, width, h_out, w_out, cin_pad):
    """Valid 3x3 conv (stride 1) + bias + parametric leaky-relu, fully fused.

    x_ref:    (N, Cin, H*W)           VMEM   NCHW, spatial flattened on lanes
    w_ref:    (Cout, kh*kw*cin_pad)   VMEM   tap-stacked weights (pad cols = 0)
    b_ref:    (Cout, 1)               VMEM
    slope_ref:(1,)                    SMEM   0.01 (lrelu) / PReLU parameter
    o_ref:    (N, Cout, h_out*w_out)  VMEM   compacted valid outputs
    slab_ref: (kh*kw*cin_pad, N*H*W)  VMEM scratch  stacked shifted images
    acc_ref:  (Cout, N*H*W)           VMEM scratch  full-width conv+act result
    """
    n, c_in, hw = x_ref.shape
    total = n * hw

    # Fold the batch onto the lane axis: (Cin, N*HW).
    x2 = x_ref[0] if n == 1 else jnp.concatenate(
        [x_ref[i] for i in range(n)], axis=-1)

    # Stack the kh*kw shifted copies along sublanes (tap stride cin_pad keeps
    # every store 8-aligned).  Pad rows are zeroed; their weights are zero too.
    slab_ref[...] = jnp.zeros(slab_ref.shape, slab_ref.dtype)
    for dh in range(kh):
        for dw in range(kw):
            t = dh * kw + dw
            off = dh * width + dw
            slab = x2 if off == 0 else pltpu.roll(x2, shift=total - off, axis=1)
            slab_ref[pl.ds(t * cin_pad, c_in), :] = slab

    # Single MXU contraction for the whole batch, fused bias + activation.
    acc = jnp.dot(w_ref[...], slab_ref[...], preferred_element_type=jnp.float32)
    acc = acc + b_ref[...]
    slope = slope_ref[0]
    acc_ref[...] = jnp.where(acc >= 0, acc, slope * acc)

    # In-kernel compaction of the valid (h_out, w_out) region: one contiguous
    # w_out-wide copy per (image, output row). No post-kernel XLA slice remains.
    for i in range(n):
        for r in range(h_out):
            src = i * hw + r * width
            o_ref[i, :, pl.ds(r * w_out, w_out)] = acc_ref[:, pl.ds(src, w_out)]


def _pool_act_kernel(x_ref, sel_ref, slope_ref, o_ref, res_ref, *, k, width):
    """MaxPool2d(kernel=k, stride=k) + parametric leaky-relu, fully fused.

    x_ref:   (N, C, H*W)               VMEM
    sel_ref: (N*H*W, N*h_out*w_out)    VMEM  0/1 matrix picking stride-k windows
    slope:   (1,)                      SMEM
    o_ref:   (N, C, h_out*w_out)       VMEM  compacted pooled outputs
    res_ref: (C, N*h_out*w_out)        VMEM scratch
    """
    n, c, hw = x_ref.shape
    total = n * hw
    n_out = o_ref.shape[-1]

    x2 = x_ref[0] if n == 1 else jnp.concatenate(
        [x_ref[i] for i in range(n)], axis=-1)

    # Separable max: horizontal offsets {1..k-1}, then vertical {W..(k-1)W}.
    hmax = x2
    for dw in range(1, k):
        hmax = jnp.maximum(hmax, pltpu.roll(x2, shift=total - dw, axis=1))
    m = hmax
    for dh in range(1, k):
        m = jnp.maximum(m, pltpu.roll(hmax, shift=total - dh * width, axis=1))

    # One exact 0/1 selection matmul compacts the stride-k window positions
    # (copying already-computed maxima, so it is numerically exact).
    res = jnp.dot(m, sel_ref[...], preferred_element_type=jnp.float32)
    slope = slope_ref[0]
    res_ref[...] = jnp.where(res >= 0, res, slope * res)
    for i in range(n):
        o_ref[i] = res_ref[:, pl.ds(i * n_out, n_out)]


# --------------------------- pallas wrappers ---------------------------------


def conv_act_pallas(x_flat, w2, bias_col, slope, *, kh, kw, height, width):
    n, c_in, hw = x_flat.shape
    c_out = w2.shape[0]
    cin_pad = w2.shape[1] // (kh * kw)
    h_out, w_out = height - kh + 1, width - kw + 1
    total = n * hw
    # Roll wrap-around must only hit discarded columns: the largest tap offset
    # from the last valid output position of the last image stays in range.
    assert (n - 1) * hw + (h_out - 1 + kh - 1) * width + (w_out - 1 + kw - 1) < total

    kernel = functools.partial(_conv_act_kernel, kh=kh, kw=kw, width=width,
                               h_out=h_out, w_out=w_out, cin_pad=cin_pad)
    return pl.pallas_call(
        kernel,
        out_shape=jax.ShapeDtypeStruct((n, c_out, h_out * w_out), x_flat.dtype),
        grid=(1,),                                    # whole batch, one step
        in_specs=[
            pl.BlockSpec((n, c_in, hw), lambda i: (0, 0, 0)),
            pl.BlockSpec((c_out, w2.shape[1]), lambda i: (0, 0)),
            pl.BlockSpec((c_out, 1), lambda i: (0, 0)),
            pl.BlockSpec(memory_space=pltpu.MemorySpace.SMEM),
        ],
        out_specs=pl.BlockSpec((n, c_out, h_out * w_out), lambda i: (0, 0, 0)),
        scratch_shapes=[
            pltpu.VMEM((kh * kw * cin_pad, total), jnp.float32),
            pltpu.VMEM((c_out, total), jnp.float32),
        ],
        compiler_params=pltpu.CompilerParams(dimension_semantics=("arbitrary",)),
    )(x_flat, w2, bias_col, slope)


def pool_act_pallas(x_flat, sel, slope, *, k, width):
    n, c, hw = x_flat.shape
    n_out_total = sel.shape[1]
    per_img = n_out_total // n
    h_out = (hw // width) // k
    w_out = width // k
    assert (n - 1) * hw + (k * (h_out - 1) + k - 1) * width + k * (w_out - 1) + k - 1 < n * hw

    kernel = functools.partial(_pool_act_kernel, k=k, width=width)
    return pl.pallas_call(
        kernel,
        out_shape=jax.ShapeDtypeStruct((n, c, per_img), x_flat.dtype),
        grid=(1,),
        in_specs=[
            pl.BlockSpec((n, c, hw), lambda i: (0, 0, 0)),
            pl.BlockSpec(sel.shape, lambda i: (0, 0)),
            pl.BlockSpec(memory_space=pltpu.MemorySpace.SMEM),
        ],
        out_specs=pl.BlockSpec((n, c, per_img), lambda i: (0, 0, 0)),
        scratch_shapes=[pltpu.VMEM((c, n_out_total), jnp.float32)],
        compiler_params=pltpu.CompilerParams(dimension_semantics=("arbitrary",)),
    )(x_flat, sel, slope)


# ------------------------- params (PyTorch-equivalent) ------------------------


def init_params(key):
    k_w, k_b = jax.random.split(key)
    fan_in = 10 * 3 * 3
    bound = 1.0 / np.sqrt(fan_in)                    # Conv2d default init
    conv_w = jax.random.uniform(k_w, (10, 10, 3, 3), jnp.float32, -bound, bound)  # OIHW
    conv_b = jax.random.uniform(k_b, (10,), jnp.float32, -bound, bound)
    prelu_a = jnp.array([0.25], jnp.float32)         # nn.PReLU default
    return {"conv_w": conv_w, "conv_b": conv_b, "prelu_a": prelu_a}


def _pool_selection_matrix(n, h, w, k):
    h_out, w_out = h // k, w // k
    sel = np.zeros((n * h * w, n * h_out * w_out), np.float32)
    for i in range(n):
        for r in range(h_out):
            for c in range(w_out):
                sel[i * h * w + (k * r) * w + k * c,
                    i * h_out * w_out + r * w_out + c] = 1.0
    return sel


def prepare_kernel_params(params, *, n, h, w, k_pool=3):
    """One-time repack into kernel-ready layouts (keeps the jitted forward free
    of per-call transpose/reshape XLA ops around the pallas_call)."""
    conv_w = np.asarray(params["conv_w"])            # (Cout, Cin, kh, kw)
    c_out, c_in, kh, kw = conv_w.shape
    cin_pad = ((c_in + 7) // 8) * 8                  # sublane-aligned tap stride
    w2 = np.zeros((c_out, kh * kw * cin_pad), np.float32)
    for dh in range(kh):
        for dw in range(kw):
            t = dh * kw + dw
            w2[:, t * cin_pad:t * cin_pad + c_in] = conv_w[:, :, dh, dw]
    return {
        "conv_w2": jnp.asarray(w2),
        "conv_b_col": jnp.asarray(np.asarray(params["conv_b"]).reshape(c_out, 1)),
        "lrelu_slope": jnp.full((1,), 0.01, jnp.float32),     # nn.LeakyReLU default
        "prelu_slope": jnp.asarray(params["prelu_a"], jnp.float32).reshape(1),
        "pool_sel": jnp.asarray(_pool_selection_matrix(n, h, w, k_pool)),
    }


# ------------------------------ forward ---------------------------------------


@functools.partial(jax.jit, static_argnames=("choice", "act"))
def my_module_forward(x_nchw, kparams, *, choice, act):
    # ModuleDict dispatch: `choice` / `act` are python strings, resolved at trace time.
    n, c, h, w = x_nchw.shape
    x_flat = x_nchw.reshape(n, c, h * w)             # free (row-major preserving)

    if act == "lrelu":
        slope = kparams["lrelu_slope"]
    elif act == "prelu":
        slope = kparams["prelu_slope"]
    else:
        raise ValueError(act)

    if choice == "conv":
        kh = kw = 3
        y = conv_act_pallas(x_flat, kparams["conv_w2"], kparams["conv_b_col"],
                            slope, kh=kh, kw=kw, height=h, width=w)
        return y.reshape(n, y.shape[1], h - kh + 1, w - kw + 1)   # free reshape
    elif choice == "pool":
        k = 3
        h_out, w_out = h // k, w // k
        sel = kparams["pool_sel"]
        assert sel.shape == (n * h * w, n * h_out * w_out)
        y = pool_act_pallas(x_flat, sel, slope, k=k, width=w)
        return y.reshape(n, c, h_out, w_out)                      # free reshape
    else:
        raise ValueError(choice)


# ------------------------------ reference ------------------------------------


def ref_forward(x_nchw, params, choice, act):
    if choice == "conv":
        y = jax.lax.conv_general_dilated(
            x_nchw, params["conv_w"], (1, 1), "VALID",
            dimension_numbers=("NCHW", "OIHW", "NCHW"))
        y = y + params["conv_b"][None, :, None, None]
    else:
        y = jax.lax.reduce_window(x_nchw, -jnp.inf, jax.lax.max,
                                  (1, 1, 3, 3), (1, 1, 3, 3), "VALID")
    slope = jnp.float32(0.01) if act == "lrelu" else params["prelu_a"][0]
    return jnp.where(y >= 0, y, slope * y)


# --------------------------------- main ---------------------------------------

if __name__ == "__main__":
    key = jax.random.PRNGKey(0)
    k_x, k_p = jax.random.split(key)
    params = init_params(k_p)
    # N=2, C=10 (fixed by Conv2d(10, 10, 3)), H=W=16 -> conv out (2,10,14,14),
    # pool out (2,10,5,5)
    x = jax.random.normal(k_x, (2, 10, 16, 16), jnp.float32)
    kparams = prepare_kernel_params(params, n=2, h=16, w=16)

    for choice in ("conv", "pool"):
        for act in ("lrelu", "prelu"):
            out = jax.block_until_ready(
                my_module_forward(x, kparams, choice=choice, act=act))
            ref = jax.block_until_ready(ref_forward(x, params, choice, act))
            assert out.shape == ref.shape, (choice, act, out.shape, ref.shape)
            np.testing.assert_allclose(np.asarray(out), np.asarray(ref),
                                       rtol=1e-2, atol=1e-2)

    print("KERNEL_OK")
</pallas_src>

<mosaic_0001>
module attributes {stable_mosaic.version = 11 : i64} {
  func.func @_conv_act_kernel(%arg0: i32, %arg1: memref<2x10x256xf32, #tpu.memory_space<vmem>>, %arg2: memref<10x144xf32, #tpu.memory_space<vmem>>, %arg3: memref<10x1xf32, #tpu.memory_space<vmem>>, %arg4: memref<1xf32, #tpu.memory_space<smem>>, %arg5: memref<2x10x196xf32, #tpu.memory_space<vmem>>, %arg6: memref<144x512xf32, #tpu.memory_space<vmem>>, %arg7: memref<10x512xf32, #tpu.memory_space<vmem>>) attributes {dimension_semantics = [#tpu.dimension_semantics<arbitrary>], iteration_bounds = array<i64: 1>, scalar_prefetch = 0 : i64, scratch_operands = 2 : i64, tpu.core_type = #tpu.core_type<tc>, window_params = [{pipeline_mode = #tpu.pipeline_mode<synchronous>, transform_indices = @transform_0, window_bounds = array<i64: 2, 10, 256>}, {pipeline_mode = #tpu.pipeline_mode<synchronous>, transform_indices = @transform_1, window_bounds = array<i64: 10, 144>}, {pipeline_mode = #tpu.pipeline_mode<synchronous>, transform_indices = @transform_2, window_bounds = array<i64: 10, 1>}, {transform_indices = @transform_3, window_bounds = array<i64: 1>}, {pipeline_mode = #tpu.pipeline_mode<synchronous>, transform_indices = @transform_4, window_bounds = array<i64: 2, 10, 196>}]} {
    %c0 = arith.constant 0 : index
    %c0_0 = arith.constant 0 : index
    %c0_1 = arith.constant 0 : index
    %0 = vector.load %arg1[%c0, %c0_0, %c0_1] : memref<2x10x256xf32, #tpu.memory_space<vmem>>, vector<1x10x256xf32>
    %1 = vector.shape_cast %0 : vector<1x10x256xf32> to vector<10x256xf32>
    %c1 = arith.constant 1 : index
    %c0_2 = arith.constant 0 : index
    %c0_3 = arith.constant 0 : index
    %2 = vector.load %arg1[%c1, %c0_2, %c0_3] : memref<2x10x256xf32, #tpu.memory_space<vmem>>, vector<1x10x256xf32>
    %3 = vector.shape_cast %2 : vector<1x10x256xf32> to vector<10x256xf32>
    %4 = tpu.concatenate %1, %3 in 1 : vector<10x256xf32>, vector<10x256xf32> -> vector<10x512xf32>
    %cst = arith.constant 0.000000e+00 : f32
    %5 = vector.broadcast %cst : f32 to vector<144x512xf32>
    %c0_4 = arith.constant 0 : index
    %c0_5 = arith.constant 0 : index
    %6 = vector.load %arg6[%c0_4, %c0_5] : memref<144x512xf32, #tpu.memory_space<vmem>>, vector<144x512xf32>
    tpu.vector_store %arg6[%c0_4, %c0_5], %5 {strides = array<i32>} : memref<144x512xf32, #tpu.memory_space<vmem>>, vector<144x512xf32>,
    %c0_6 = arith.constant 0 : index
    %c0_7 = arith.constant 0 : index
    %7 = vector.load %arg6[%c0_6, %c0_7] : memref<144x512xf32, #tpu.memory_space<vmem>>, vector<10x512xf32>
    tpu.vector_store %arg6[%c0_6, %c0_7], %4 {strides = array<i32>} : memref<144x512xf32, #tpu.memory_space<vmem>>, vector<10x512xf32>,
    %c511_i32 = arith.constant 511 : i32
    %8 = tpu.dynamic_rotate %4 by %c511_i32 dim 1 : vector<10x512xf32>, i32 -> vector<10x512xf32>
    %c16 = arith.constant 16 : index
    %c0_8 = arith.constant 0 : index
    %9 = vector.load %arg6[%c16, %c0_8] : memref<144x512xf32, #tpu.memory_space<vmem>>, vector<10x512xf32>
    tpu.vector_store %arg6[%c16, %c0_8], %8 {strides = array<i32>} : memref<144x512xf32, #tpu.memory_space<vmem>>, vector<10x512xf32>,
    %c510_i32 = arith.constant 510 : i32
    %10 = tpu.dynamic_rotate %4 by %c510_i32 dim 1 : vector<10x512xf32>, i32 -> vector<10x512xf32>
    %c32 = arith.constant 32 : index
    %c0_9 = arith.constant 0 : index
    %11 = vector.load %arg6[%c32, %c0_9] : memref<144x512xf32, #tpu.memory_space<vmem>>, vector<10x512xf32>
    tpu.vector_store %arg6[%c32, %c0_9], %10 {strides = array<i32>} : memref<144x512xf32, #tpu.memory_space<vmem>>, vector<10x512xf32>,
    %c496_i32 = arith.constant 496 : i32
    %12 = tpu.dynamic_rotate %4 by %c496_i32 dim 1 : vector<10x512xf32>, i32 -> vector<10x512xf32>
    %c48 = arith.constant 48 : index
    %c0_10 = arith.constant 0 : index
    %13 = vector.load %arg6[%c48, %c0_10] : memref<144x512xf32, #tpu.memory_space<vmem>>, vector<10x512xf32>
    tpu.vector_store %arg6[%c48, %c0_10], %12 {strides = array<i32>} : memref<144x512xf32, #tpu.memory_space<vmem>>, vector<10x512xf32>,
    %c495_i32 = arith.constant 495 : i32
    %14 = tpu.dynamic_rotate %4 by %c495_i32 dim 1 : vector<10x512xf32>, i32 -> vector<10x512xf32>
    %c64 = arith.constant 64 : index
    %c0_11 = arith.constant 0 : index
    %15 = vector.load %arg6[%c64, %c0_11] : memref<144x512xf32, #tpu.memory_space<vmem>>, vector<10x512xf32>
    tpu.vector_store %arg6[%c64, %c0_11], %14 {strides = array<i32>} : memref<144x512xf32, #tpu.memory_space<vmem>>, vector<10x512xf32>,
    %c494_i32 = arith.constant 494 : i32
    %16 = tpu.dynamic_rotate %4 by %c494_i32 dim 1 : vector<10x512xf32>, i32 -> vector<10x512xf32>
    %c80 = arith.constant 80 : index
    %c0_12 = arith.constant 0 : index
    %17 = vector.load %arg6[%c80, %c0_12] : memref<144x512xf32, #tpu.memory_space<vmem>>, vector<10x512xf32>
    tpu.vector_store %arg6[%c80, %c0_12], %16 {strides = array<i32>} : memref<144x512xf32, #tpu.memory_space<vmem>>, vector<10x512xf32>,
    %c480_i32 = arith.constant 480 : i32
    %18 = tpu.dynamic_rotate %4 by %c480_i32 dim 1 : vector<10x512xf32>, i32 -> vector<10x512xf32>
    %c96 = arith.constant 96 : index
    %c0_13 = arith.constant 0 : index
    %19 = vector.load %arg6[%c96, %c0_13] : memref<144x512xf32, #tpu.memory_space<vmem>>, vector<10x512xf32>
    tpu.vector_store %arg6[%c96, %c0_13], %18 {strides = array<i32>} : memref<144x512xf32, #tpu.memory_space<vmem>>, vector<10x512xf32>,
    %c479_i32 = arith.constant 479 : i32
    %20 = tpu.dynamic_rotate %4 by %c479_i32 dim 1 : vector<10x512xf32>, i32 -> vector<10x512xf32>
    %c112 = arith.constant 112 : index
    %c0_14 = arith.constant 0 : index
    %21 = vector.load %arg6[%c112, %c0_14] : memref<144x512xf32, #tpu.memory_space<vmem>>, vector<10x512xf32>
    tpu.vector_store %arg6[%c112, %c0_14], %20 {strides = array<i32>} : memref<144x512xf32, #tpu.memory_space<vmem>>, vector<10x512xf32>,
    %c478_i32 = arith.constant 478 : i32
    %22 = tpu.dynamic_rotate %4 by %c478_i32 dim 1 : vector<10x512xf32>, i32 -> vector<10x512xf32>
    %c128 = arith.constant 128 : index
    %c0_15 = arith.constant 0 : index
    %23 = vector.load %arg6[%c128, %c0_15] : memref<144x512xf32, #tpu.memory_space<vmem>>, vector<10x512xf32>
    tpu.vector_store %arg6[%c128, %c0_15], %22 {strides = array<i32>} : memref<144x512xf32, #tpu.memory_space<vmem>>, vector<10x512xf32>,
    %c0_16 = arith.constant 0 : index
    %c0_17 = arith.constant 0 : index
    %24 = vector.load %arg2[%c0_16, %c0_17] : memref<10x144xf32, #tpu.memory_space<vmem>>, vector<10x144xf32>
    %c0_18 = arith.constant 0 : index
    %c0_19 = arith.constant 0 : index
    %25 = vector.load %arg6[%c0_18, %c0_19] : memref<144x512xf32, #tpu.memory_space<vmem>>, vector<144x512xf32>
    %cst_20 = arith.constant dense<0.000000e+00> : vector<10x512xf32>
    %26 = tpu.matmul %24, %25, %cst_20 {dimension_numbers = #tpu.dot_dimension_numbers<[1], [0], [0], [1], [0, 0, 1, 1], [], []>} : vector<10x144xf32>, vector<144x512xf32>, vector<10x512xf32> -> vector<10x512xf32>
    %c0_21 = arith.constant 0 : index
    %c0_22 = arith.constant 0 : index
    %27 = vector.load %arg3[%c0_21, %c0_22] : memref<10x1xf32, #tpu.memory_space<vmem>>, vector<10x1xf32>
    %28 = vector.broadcast %27 : vector<10x1xf32> to vector<10x512xf32>
    %29 = arith.addf %26, %28 : vector<10x512xf32>
    %c0_23 = arith.constant 0 : index
    %30 = memref.load %arg4[%c0_23] : memref<1xf32, #tpu.memory_space<smem>>
    %cst_24 = arith.constant 0.000000e+00 : f32
    %31 = vector.broadcast %cst_24 : f32 to vector<10x512xf32>
    %32 = arith.cmpf oge, %29, %31 : vector<10x512xf32>
    %33 = vector.broadcast %30 : f32 to vector<10x512xf32>
    %34 = arith.mulf %33, %29 : vector<10x512xf32>
    %35 = arith.select %32, %29, %34 : vector<10x512xi1>, vector<10x512xf32>
    %c0_25 = arith.constant 0 : index
    %c0_26 = arith.constant 0 : index
    %36 = vector.load %arg7[%c0_25, %c0_26] : memref<10x512xf32, #tpu.memory_space<vmem>>, vector<10x512xf32>
    tpu.vector_store %arg7[%c0_25, %c0_26], %35 {strides = array<i32>} : memref<10x512xf32, #tpu.memory_space<vmem>>, vector<10x512xf32>,
    %c0_27 = arith.constant 0 : index
    %c0_28 = arith.constant 0 : index
    %37 = vector.load %arg7[%c0_27, %c0_28] : memref<10x512xf32, #tpu.memory_space<vmem>>, vector<10x14xf32>
    %c0_29 = arith.constant 0 : index
    %c0_30 = arith.constant 0 : index
    %c0_31 = arith.constant 0 : index
    %38 = vector.load %arg5[%c0_29, %c0_30, %c0_31] : memref<2x10x196xf32, #tpu.memory_space<vmem>>, vector<1x10x14xf32>
    %39 = vector.shape_cast %38 : vector<1x10x14xf32> to vector<10x14xf32>
    %40 = vector.shape_cast %37 : vector<10x14xf32> to vector<1x10x14xf32>
    tpu.vector_store %arg5[%c0_29, %c0_30, %c0_31], %40 {strides = array<i32>} : memref<2x10x196xf32, #tpu.memory_space<vmem>>, vector<1x10x14xf32>,
    %c0_32 = arith.constant 0 : index
    %c16_33 = arith.constant 16 : index
    %41 = vector.load %arg7[%c0_32, %c16_33] : memref<10x512xf32, #tpu.memory_space<vmem>>, vector<10x14xf32>
    %c0_34 = arith.constant 0 : index
    %c0_35 = arith.constant 0 : index
    %c14 = arith.constant 14 : index
    %42 = vector.load %arg5[%c0_34, %c0_35, %c14] : memref<2x10x196xf32, #tpu.memory_space<vmem>>, vector<1x10x14xf32>
    %43 = vector.shape_cast %42 : vector<1x10x14xf32> to vector<10x14xf32>
    %44 = vector.shape_cast %41 : vector<10x14xf32> to vector<1x10x14xf32>
    tpu.vector_store %arg5[%c0_34, %c0_35, %c14], %44 {strides = array<i32>} : memref<2x10x196xf32, #tpu.memory_space<vmem>>, vector<1x10x14xf32>,
    %c0_36 = arith.constant 0 : index
    %c32_37 = arith.constant 32 : index
    %45 = vector.load %arg7[%c0_36, %c32_37] : memref<10x512xf32, #tpu.memory_space<vmem>>, vector<10x14xf32>
    %c0_38 = arith.constant 0 : index
    %c0_39 = arith.constant 0 : index
    %c28 = arith.constant 28 : index
    %46 = vector.load %arg5[%c0_38, %c0_39, %c28] : memref<2x10x196xf32, #tpu.memory_space<vmem>>, vector<1x10x14xf32>
    %47 = vector.shape_cast %46 : vector<1x10x14xf32> to vector<10x14xf32>
    %48 = vector.shape_cast %45 : vector<10x14xf32> to vector<1x10x14xf32>
    tpu.vector_store %arg5[%c0_38, %c0_39, %c28], %48 {strides = array<i32>} : memref<2x10x196xf32, #tpu.memory_space<vmem>>, vector<1x10x14xf32>,
    %c0_40 = arith.constant 0 : index
    %c48_41 = arith.constant 48 : index
    %49 = vector.load %arg7[%c0_40, %c48_41] : memref<10x512xf32, #tpu.memory_space<vmem>>, vector<10x14xf32>
    %c0_42 = arith.constant 0 : index
    %c0_43 = arith.constant 0 : index
    %c42 = arith.constant 42 : index
    %50 = vector.load %arg5[%c0_42, %c0_43, %c42] : memref<2x10x196xf32, #tpu.memory_space<vmem>>, vector<1x10x14xf32>
    %51 = vector.shape_cast %50 : vector<1x10x14xf32> to vector<10x14xf32>
    %52 = vector.shape_cast %49 : vector<10x14xf32> to vector<1x10x14xf32>
    tpu.vector_store %arg5[%c0_42, %c0_43, %c42], %52 {strides = array<i32>} : memref<2x10x196xf32, #tpu.memory_space<vmem>>, vector<1x10x14xf32>,
    %c0_44 = arith.constant 0 : index
    %c64_45 = arith.constant 64 : index
    %53 = vector.load %arg7[%c0_44, %c64_45] : memref<10x512xf32, #tpu.memory_space<vmem>>, vector<10x14xf32>
    %c0_46 = arith.constant 0 : index
    %c0_47 = arith.constant 0 : index
    %c56 = arith.constant 56 : index
    %54 = vector.load %arg5[%c0_46, %c0_47, %c56] : memref<2x10x196xf32, #tpu.memory_space<vmem>>, vector<1x10x14xf32>
    %55 = vector.shape_cast %54 : vector<1x10x14xf32> to vector<10x14xf32>
    %56 = vector.shape_cast %53 : vector<10x14xf32> to vector<1x10x14xf32>
    tpu.vector_store %arg5[%c0_46, %c0_47, %c56], %56 {strides = array<i32>} : memref<2x10x196xf32, #tpu.memory_space<vmem>>, vector<1x10x14xf32>,
    %c0_48 = arith.constant 0 : index
    %c80_49 = arith.constant 80 : index
    %57 = vector.load %arg7[%c0_48, %c80_49] : memref<10x512xf32, #tpu.memory_space<vmem>>, vector<10x14xf32>
    %c0_50 = arith.constant 0 : index
    %c0_51 = arith.constant 0 : index
    %c70 = arith.constant 70 : index
    %58 = vector.load %arg5[%c0_50, %c0_51, %c70] : memref<2x10x196xf32, #tpu.memory_space<vmem>>, vector<1x10x14xf32>
    %59 = vector.shape_cast %58 : vector<1x10x14xf32> to vector<10x14xf32>
    %60 = vector.shape_cast %57 : vector<10x14xf32> to vector<1x10x14xf32>
    tpu.vector_store %arg5[%c0_50, %c0_51, %c70], %60 {strides = array<i32>} : memref<2x10x196xf32, #tpu.memory_space<vmem>>, vector<1x10x14xf32>,
    %c0_52 = arith.constant 0 : index
    %c96_53 = arith.constant 96 : index
    %61 = vector.load %arg7[%c0_52, %c96_53] : memref<10x512xf32, #tpu.memory_space<vmem>>, vector<10x14xf32>
    %c0_54 = arith.constant 0 : index
    %c0_55 = arith.constant 0 : index
    %c84 = arith.constant 84 : index
    %62 = vector.load %arg5[%c0_54, %c0_55, %c84] : memref<2x10x196xf32, #tpu.memory_space<vmem>>, vector<1x10x14xf32>
    %63 = vector.shape_cast %62 : vector<1x10x14xf32> to vector<10x14xf32>
    %64 = vector.shape_cast %61 : vector<10x14xf32> to vector<1x10x14xf32>
    tpu.vector_store %arg5[%c0_54, %c0_55, %c84], %64 {strides = array<i32>} : memref<2x10x196xf32, #tpu.memory_space<vmem>>, vector<1x10x14xf32>,
    %c0_56 = arith.constant 0 : index
    %c112_57 = arith.constant 112 : index
    %65 = vector.load %arg7[%c0_56, %c112_57] : memref<10x512xf32, #tpu.memory_space<vmem>>, vector<10x14xf32>
    %c0_58 = arith.constant 0 : index
    %c0_59 = arith.constant 0 : index
    %c98 = arith.constant 98 : index
    %66 = vector.load %arg5[%c0_58, %c0_59, %c98] : memref<2x10x196xf32, #tpu.memory_space<vmem>>, vector<1x10x14xf32>
    %67 = vector.shape_cast %66 : vector<1x10x14xf32> to vector<10x14xf32>
    %68 = vector.shape_cast %65 : vector<10x14xf32> to vector<1x10x14xf32>
    tpu.vector_store %arg5[%c0_58, %c0_59, %c98], %68 {strides = array<i32>} : memref<2x10x196xf32, #tpu.memory_space<vmem>>, vector<1x10x14xf32>,
    %c0_60 = arith.constant 0 : index
    %c128_61 = arith.constant 128 : index
    %69 = vector.load %arg7[%c0_60, %c128_61] : memref<10x512xf32, #tpu.memory_space<vmem>>, vector<10x14xf32>
    %c0_62 = arith.constant 0 : index
    %c0_63 = arith.constant 0 : index
    %c112_64 = arith.constant 112 : index
    %70 = vector.load %arg5[%c0_62, %c0_63, %c112_64] : memref<2x10x196xf32, #tpu.memory_space<vmem>>, vector<1x10x14xf32>
    %71 = vector.shape_cast %70 : vector<1x10x14xf32> to vector<10x14xf32>
    %72 = vector.shape_cast %69 : vector<10x14xf32> to vector<1x10x14xf32>
    tpu.vector_store %arg5[%c0_62, %c0_63, %c112_64], %72 {strides = array<i32>} : memref<2x10x196xf32, #tpu.memory_space<vmem>>, vector<1x10x14xf32>,
    %c0_65 = arith.constant 0 : index
    %c144 = arith.constant 144 : index
    %73 = vector.load %arg7[%c0_65, %c144] : memref<10x512xf32, #tpu.memory_space<vmem>>, vector<10x14xf32>
    %c0_66 = arith.constant 0 : index
    %c0_67 = arith.constant 0 : index
    %c126 = arith.constant 126 : index
    %74 = vector.load %arg5[%c0_66, %c0_67, %c126] : memref<2x10x196xf32, #tpu.memory_space<vmem>>, vector<1x10x14xf32>
    %75 = vector.shape_cast %74 : vector<1x10x14xf32> to vector<10x14xf32>
    %76 = vector.shape_cast %73 : vector<10x14xf32> to vector<1x10x14xf32>
    tpu.vector_store %arg5[%c0_66, %c0_67, %c126], %76 {strides = array<i32>} : memref<2x10x196xf32, #tpu.memory_space<vmem>>, vector<1x10x14xf32>,
    %c0_68 = arith.constant 0 : index
    %c160 = arith.constant 160 : index
    %77 = vector.load %arg7[%c0_68, %c160] : memref<10x512xf32, #tpu.memory_space<vmem>>, vector<10x14xf32>
    %c0_69 = arith.constant 0 : index
    %c0_70 = arith.constant 0 : index
    %c140 = arith.constant 140 : index
    %78 = vector.load %arg5[%c0_69, %c0_70, %c140] : memref<2x10x196xf32, #tpu.memory_space<vmem>>, vector<1x10x14xf32>
    %79 = vector.shape_cast %78 : vector<1x10x14xf32> to vector<10x14xf32>
    %80 = vector.shape_cast %77 : vector<10x14xf32> to vector<1x10x14xf32>
    tpu.vector_store %arg5[%c0_69, %c0_70, %c140], %80 {strides = array<i32>} : memref<2x10x196xf32, #tpu.memory_space<vmem>>, vector<1x10x14xf32>,
    %c0_71 = arith.constant 0 : index
    %c176 = arith.constant 176 : index
    %81 = vector.load %arg7[%c0_71, %c176] : memref<10x512xf32, #tpu.memory_space<vmem>>, vector<10x14xf32>
    %c0_72 = arith.constant 0 : index
    %c0_73 = arith.constant 0 : index
    %c154 = arith.constant 154 : index
    %82 = vector.load %arg5[%c0_72, %c0_73, %c154] : memref<2x10x196xf32, #tpu.memory_space<vmem>>, vector<1x10x14xf32>
    %83 = vector.shape_cast %82 : vector<1x10x14xf32> to vector<10x14xf32>
    %84 = vector.shape_cast %81 : vector<10x14xf32> to vector<1x10x14xf32>
    tpu.vector_store %arg5[%c0_72, %c0_73, %c154], %84 {strides = array<i32>} : memref<2x10x196xf32, #tpu.memory_space<vmem>>, vector<1x10x14xf32>,
    %c0_74 = arith.constant 0 : index
    %c192 = arith.constant 192 : index
    %85 = vector.load %arg7[%c0_74, %c192] : memref<10x512xf32, #tpu.memory_space<vmem>>, vector<10x14xf32>
    %c0_75 = arith.constant 0 : index
    %c0_76 = arith.constant 0 : index
    %c168 = arith.constant 168 : index
    %86 = vector.load %arg5[%c0_75, %c0_76, %c168] : memref<2x10x196xf32, #tpu.memory_space<vmem>>, vector<1x10x14xf32>
    %87 = vector.shape_cast %86 : vector<1x10x14xf32> to vector<10x14xf32>
    %88 = vector.shape_cast %85 : vector<10x14xf32> to vector<1x10x14xf32>
    tpu.vector_store %arg5[%c0_75, %c0_76, %c168], %88 {strides = array<i32>} : memref<2x10x196xf32, #tpu.memory_space<vmem>>, vector<1x10x14xf32>,
    %c0_77 = arith.constant 0 : index
    %c208 = arith.constant 208 : index
    %89 = vector.load %arg7[%c0_77, %c208] : memref<10x512xf32, #tpu.memory_space<vmem>>, vector<10x14xf32>
    %c0_78 = arith.constant 0 : index
    %c0_79 = arith.constant 0 : index
    %c182 = arith.constant 182 : index
    %90 = vector.load %arg5[%c0_78, %c0_79, %c182] : memref<2x10x196xf32, #tpu.memory_space<vmem>>, vector<1x10x14xf32>
    %91 = vector.shape_cast %90 : vector<1x10x14xf32> to vector<10x14xf32>
    %92 = vector.shape_cast %89 : vector<10x14xf32> to vector<1x10x14xf32>
    tpu.vector_store %arg5[%c0_78, %c0_79, %c182], %92 {strides = array<i32>} : memref<2x10x196xf32, #tpu.memory_space<vmem>>, vector<1x10x14xf32>,
    %c0_80 = arith.constant 0 : index
    %c256 = arith.constant 256 : index
    %93 = vector.load %arg7[%c0_80, %c256] : memref<10x512xf32, #tpu.memory_space<vmem>>, vector<10x14xf32>
    %c1_81 = arith.constant 1 : index
    %c0_82 = arith.constant 0 : index
    %c0_83 = arith.constant 0 : index
    %94 = vector.load %arg5[%c1_81, %c0_82, %c0_83] : memref<2x10x196xf32, #tpu.memory_space<vmem>>, vector<1x10x14xf32>
    %95 = vector.shape_cast %94 : vector<1x10x14xf32> to vector<10x14xf32>
    %96 = vector.shape_cast %93 : vector<10x14xf32> to vector<1x10x14xf32>
    tpu.vector_store %arg5[%c1_81, %c0_82, %c0_83], %96 {strides = array<i32>} : memref<2x10x196xf32, #tpu.memory_space<vmem>>, vector<1x10x14xf32>,
    %c0_84 = arith.constant 0 : index
    %c272 = arith.constant 272 : index
    %97 = vector.load %arg7[%c0_84, %c272] : memref<10x512xf32, #tpu.memory_space<vmem>>, vector<10x14xf32>
    %c1_85 = arith.constant 1 : index
    %c0_86 = arith.constant 0 : index
    %c14_87 = arith.constant 14 : index
    %98 = vector.load %arg5[%c1_85, %c0_86, %c14_87] : memref<2x10x196xf32, #tpu.memory_space<vmem>>, vector<1x10x14xf32>
    %99 = vector.shape_cast %98 : vector<1x10x14xf32> to vector<10x14xf32>
    %100 = vector.shape_cast %97 : vector<10x14xf32> to vector<1x10x14xf32>
    tpu.vector_store %arg5[%c1_85, %c0_86, %c14_87], %100 {strides = array<i32>} : memref<2x10x196xf32, #tpu.memory_space<vmem>>, vector<1x10x14xf32>,
    %c0_88 = arith.constant 0 : index
    %c288 = arith.constant 288 : index
    %101 = vector.load %arg7[%c0_88, %c288] : memref<10x512xf32, #tpu.memory_space<vmem>>, vector<10x14xf32>
    %c1_89 = arith.constant 1 : index
    %c0_90 = arith.constant 0 : index
    %c28_91 = arith.constant 28 : index
    %102 = vector.load %arg5[%c1_89, %c0_90, %c28_91] : memref<2x10x196xf32, #tpu.memory_space<vmem>>, vector<1x10x14xf32>
    %103 = vector.shape_cast %102 : vector<1x10x14xf32> to vector<10x14xf32>
    %104 = vector.shape_cast %101 : vector<10x14xf32> to vector<1x10x14xf32>
    tpu.vector_store %arg5[%c1_89, %c0_90, %c28_91], %104 {strides = array<i32>} : memref<2x10x196xf32, #tpu.memory_space<vmem>>, vector<1x10x14xf32>,
    %c0_92 = arith.constant 0 : index
    %c304 = arith.constant 304 : index
    %105 = vector.load %arg7[%c0_92, %c304] : memref<10x512xf32, #tpu.memory_space<vmem>>, vector<10x14xf32>
    %c1_93 = arith.constant 1 : index
    %c0_94 = arith.constant 0 : index
    %c42_95 = arith.constant 42 : index
    %106 = vector.load %arg5[%c1_93, %c0_94, %c42_95] : memref<2x10x196xf32, #tpu.memory_space<vmem>>, vector<1x10x14xf32>
    %107 = vector.shape_cast %106 : vector<1x10x14xf32> to vector<10x14xf32>
    %108 = vector.shape_cast %105 : vector<10x14xf32> to vector<1x10x14xf32>
    tpu.vector_store %arg5[%c1_93, %c0_94, %c42_95], %108 {strides = array<i32>} : memref<2x10x196xf32, #tpu.memory_space<vmem>>, vector<1x10x14xf32>,
    %c0_96 = arith.constant 0 : index
    %c320 = arith.constant 320 : index
    %109 = vector.load %arg7[%c0_96, %c320] : memref<10x512xf32, #tpu.memory_space<vmem>>, vector<10x14xf32>
    %c1_97 = arith.constant 1 : index
    %c0_98 = arith.constant 0 : index
    %c56_99 = arith.constant 56 : index
    %110 = vector.load %arg5[%c1_97, %c0_98, %c56_99] : memref<2x10x196xf32, #tpu.memory_space<vmem>>, vector<1x10x14xf32>
    %111 = vector.shape_cast %110 : vector<1x10x14xf32> to vector<10x14xf32>
    %112 = vector.shape_cast %109 : vector<10x14xf32> to vector<1x10x14xf32>
    tpu.vector_store %arg5[%c1_97, %c0_98, %c56_99], %112 {strides = array<i32>} : memref<2x10x196xf32, #tpu.memory_space<vmem>>, vector<1x10x14xf32>,
    %c0_100 = arith.constant 0 : index
    %c336 = arith.constant 336 : index
    %113 = vector.load %arg7[%c0_100, %c336] : memref<10x512xf32, #tpu.memory_space<vmem>>, vector<10x14xf32>
    %c1_101 = arith.constant 1 : index
    %c0_102 = arith.constant 0 : index
    %c70_103 = arith.constant 70 : index
    %114 = vector.load %arg5[%c1_101, %c0_102, %c70_103] : memref<2x10x196xf32, #tpu.memory_space<vmem>>, vector<1x10x14xf32>
    %115 = vector.shape_cast %114 : vector<1x10x14xf32> to vector<10x14xf32>
    %116 = vector.shape_cast %113 : vector<10x14xf32> to vector<1x10x14xf32>
    tpu.vector_store %arg5[%c1_101, %c0_102, %c70_103], %116 {strides = array<i32>} : memref<2x10x196xf32, #tpu.memory_space<vmem>>, vector<1x10x14xf32>,
    %c0_104 = arith.constant 0 : index
    %c352 = arith.constant 352 : index
    %117 = vector.load %arg7[%c0_104, %c352] : memref<10x512xf32, #tpu.memory_space<vmem>>, vector<10x14xf32>
    %c1_105 = arith.constant 1 : index
    %c0_106 = arith.constant 0 : index
    %c84_107 = arith.constant 84 : index
    %118 = vector.load %arg5[%c1_105, %c0_106, %c84_107] : memref<2x10x196xf32, #tpu.memory_space<vmem>>, vector<1x10x14xf32>
    %119 = vector.shape_cast %118 : vector<1x10x14xf32> to vector<10x14xf32>
    %120 = vector.shape_cast %117 : vector<10x14xf32> to vector<1x10x14xf32>
    tpu.vector_store %arg5[%c1_105, %c0_106, %c84_107], %120 {strides = array<i32>} : memref<2x10x196xf32, #tpu.memory_space<vmem>>, vector<1x10x14xf32>,
    %c0_108 = arith.constant 0 : index
    %c368 = arith.constant 368 : index
    %121 = vector.load %arg7[%c0_108, %c368] : memref<10x512xf32, #tpu.memory_space<vmem>>, vector<10x14xf32>
    %c1_109 = arith.constant 1 : index
    %c0_110 = arith.constant 0 : index
    %c98_111 = arith.constant 98 : index
    %122 = vector.load %arg5[%c1_109, %c0_110, %c98_111] : memref<2x10x196xf32, #tpu.memory_space<vmem>>, vector<1x10x14xf32>
    %123 = vector.shape_cast %122 : vector<1x10x14xf32> to vector<10x14xf32>
    %124 = vector.shape_cast %121 : vector<10x14xf32> to vector<1x10x14xf32>
    tpu.vector_store %arg5[%c1_109, %c0_110, %c98_111], %124 {strides = array<i32>} : memref<2x10x196xf32, #tpu.memory_space<vmem>>, vector<1x10x14xf32>,
    %c0_112 = arith.constant 0 : index
    %c384 = arith.constant 384 : index
    %125 = vector.load %arg7[%c0_112, %c384] : memref<10x512xf32, #tpu.memory_space<vmem>>, vector<10x14xf32>
    %c1_113 = arith.constant 1 : index
    %c0_114 = arith.constant 0 : index
    %c112_115 = arith.constant 112 : index
    %126 = vector.load %arg5[%c1_113, %c0_114, %c112_115] : memref<2x10x196xf32, #tpu.memory_space<vmem>>, vector<1x10x14xf32>
    %127 = vector.shape_cast %126 : vector<1x10x14xf32> to vector<10x14xf32>
    %128 = vector.shape_cast %125 : vector<10x14xf32> to vector<1x10x14xf32>
    tpu.vector_store %arg5[%c1_113, %c0_114, %c112_115], %128 {strides = array<i32>} : memref<2x10x196xf32, #tpu.memory_space<vmem>>, vector<1x10x14xf32>,
    %c0_116 = arith.constant 0 : index
    %c400 = arith.constant 400 : index
    %129 = vector.load %arg7[%c0_116, %c400] : memref<10x512xf32, #tpu.memory_space<vmem>>, vector<10x14xf32>
    %c1_117 = arith.constant 1 : index
    %c0_118 = arith.constant 0 : index
    %c126_119 = arith.constant 126 : index
    %130 = vector.load %arg5[%c1_117, %c0_118, %c126_119] : memref<2x10x196xf32, #tpu.memory_space<vmem>>, vector<1x10x14xf32>
    %131 = vector.shape_cast %130 : vector<1x10x14xf32> to vector<10x14xf32>
    %132 = vector.shape_cast %129 : vector<10x14xf32> to vector<1x10x14xf32>
    tpu.vector_store %arg5[%c1_117, %c0_118, %c126_119], %132 {strides = array<i32>} : memref<2x10x196xf32, #tpu.memory_space<vmem>>, vector<1x10x14xf32>,
    %c0_120 = arith.constant 0 : index
    %c416 = arith.constant 416 : index
    %133 = vector.load %arg7[%c0_120, %c416] : memref<10x512xf32, #tpu.memory_space<vmem>>, vector<10x14xf32>
    %c1_121 = arith.constant 1 : index
    %c0_122 = arith.constant 0 : index
    %c140_123 = arith.constant 140 : index
    %134 = vector.load %arg5[%c1_121, %c0_122, %c140_123] : memref<2x10x196xf32, #tpu.memory_space<vmem>>, vector<1x10x14xf32>
    %135 = vector.shape_cast %134 : vector<1x10x14xf32> to vector<10x14xf32>
    %136 = vector.shape_cast %133 : vector<10x14xf32> to vector<1x10x14xf32>
    tpu.vector_store %arg5[%c1_121, %c0_122, %c140_123], %136 {strides = array<i32>} : memref<2x10x196xf32, #tpu.memory_space<vmem>>, vector<1x10x14xf32>,
    %c0_124 = arith.constant 0 : index
    %c432 = arith.constant 432 : index
    %137 = vector.load %arg7[%c0_124, %c432] : memref<10x512xf32, #tpu.memory_space<vmem>>, vector<10x14xf32>
    %c1_125 = arith.constant 1 : index
    %c0_126 = arith.constant 0 : index
    %c154_127 = arith.constant 154 : index
    %138 = vector.load %arg5[%c1_125, %c0_126, %c154_127] : memref<2x10x196xf32, #tpu.memory_space<vmem>>, vector<1x10x14xf32>
    %139 = vector.shape_cast %138 : vector<1x10x14xf32> to vector<10x14xf32>
    %140 = vector.shape_cast %137 : vector<10x14xf32> to vector<1x10x14xf32>
    tpu.vector_store %arg5[%c1_125, %c0_126, %c154_127], %140 {strides = array<i32>} : memref<2x10x196xf32, #tpu.memory_space<vmem>>, vector<1x10x14xf32>,
    %c0_128 = arith.constant 0 : index
    %c448 = arith.constant 448 : index
    %141 = vector.load %arg7[%c0_128, %c448] : memref<10x512xf32, #tpu.memory_space<vmem>>, vector<10x14xf32>
    %c1_129 = arith.constant 1 : index
    %c0_130 = arith.constant 0 : index
    %c168_131 = arith.constant 168 : index
    %142 = vector.load %arg5[%c1_129, %c0_130, %c168_131] : memref<2x10x196xf32, #tpu.memory_space<vmem>>, vector<1x10x14xf32>
    %143 = vector.shape_cast %142 : vector<1x10x14xf32> to vector<10x14xf32>
    %144 = vector.shape_cast %141 : vector<10x14xf32> to vector<1x10x14xf32>
    tpu.vector_store %arg5[%c1_129, %c0_130, %c168_131], %144 {strides = array<i32>} : memref<2x10x196xf32, #tpu.memory_space<vmem>>, vector<1x10x14xf32>,
    %c0_132 = arith.constant 0 : index
    %c464 = arith.constant 464 : index
    %145 = vector.load %arg7[%c0_132, %c464] : memref<10x512xf32, #tpu.memory_space<vmem>>, vector<10x14xf32>
    %c1_133 = arith.constant 1 : index
    %c0_134 = arith.constant 0 : index
    %c182_135 = arith.constant 182 : index
    %146 = vector.load %arg5[%c1_133, %c0_134, %c182_135] : memref<2x10x196xf32, #tpu.memory_space<vmem>>, vector<1x10x14xf32>
    %147 = vector.shape_cast %146 : vector<1x10x14xf32> to vector<10x14xf32>
    %148 = vector.shape_cast %145 : vector<10x14xf32> to vector<1x10x14xf32>
    tpu.vector_store %arg5[%c1_133, %c0_134, %c182_135], %148 {strides = array<i32>} : memref<2x10x196xf32, #tpu.memory_space<vmem>>, vector<1x10x14xf32>,
    return
  }
  func.func @transform_0(%arg0: i32) -> (i32, i32, i32) {
    %c0_i32 = arith.constant 0 : i32
    %c0_i32_0 = arith.constant 0 : i32
    %c0_i32_1 = arith.constant 0 : i32
    %c0_i32_2 = arith.constant 0 : i32
    return %c0_i32, %c0_i32_0, %c0_i32_1 : i32, i32, i32
  }
  func.func @transform_1(%arg0: i32) -> (i32, i32) {
    %c0_i32 = arith.constant 0 : i32
    %c0_i32_0 = arith.constant 0 : i32
    %c0_i32_1 = arith.constant 0 : i32
    return %c0_i32, %c0_i32_0 : i32, i32
  }
  func.func @transform_2(%arg0: i32) -> (i32, i32) {
    %c0_i32 = arith.constant 0 : i32
    %c0_i32_0 = arith.constant 0 : i32
    %c0_i32_1 = arith.constant 0 : i32
    return %c0_i32, %c0_i32_0 : i32, i32
  }
  func.func @transform_3(%arg0: i32) -> i32 {
    %c0_i32 = arith.constant 0 : i32
    %c0_i32_0 = arith.constant 0 : i32
    return %c0_i32 : i32
  }
  func.func @transform_4(%arg0: i32) -> (i32, i32, i32) {
    %c0_i32 = arith.constant 0 : i32
    %c0_i32_0 = arith.constant 0 : i32
    %c0_i32_1 = arith.constant 0 : i32
    %c0_i32_2 = arith.constant 0 : i32
    return %c0_i32, %c0_i32_0, %c0_i32_1 : i32, i32, i32
  }
}

</mosaic_0001>

<llo_original>
// kernel: my_module_forward.1
$region0: #{my_module_forward.1}
  #allocation0 [shape = 'u32[]', space=smem, size = 0x4, offset = 0x4, fixed_abs, tag = 'smem constant byte address 0x4 - core index']
  #allocation1 [shape = 'u32[144,128]{1,0:T(1,128)}', space=vmem, size = 0x12000, scoped, tag = 'internal scratch']
  #allocation2 [shape = 'f32[144,512]{1,0:T(8,128)}', space=vmem, size = 0x48000, scoped, tag = 'scratch operand']
  #allocation3 [shape = 'f32[10,512]{1,0:T(8,128)}', space=vmem, size = 0x8000, scoped, tag = 'scratch operand']
  #allocation4 [shape = 'f32[1]{0:T(128)S(6)}', space=smem, size = 0x200, scoped, tag = 'scoped memory for my_module_forward.1']
  %s0 = inlined_call_operand.vmem [shape: f32[2,10,256], index: 0, kind: input, shape index: {}]
  %s1 = inlined_call_operand.vmem [shape: f32[10,144], index: 1, kind: input, shape index: {}]
  %s2 = inlined_call_operand.vmem [shape: f32[10,1], index: 2, kind: input, shape index: {}]
  %s3 = inlined_call_operand.<no memory space> [shape: f32[1], index: 3, kind: input, shape index: {}]
  %s4 = inlined_call_operand.vmem [shape: f32[2,10,196], index: 4, kind: output, shape index: {}]
  %s5 = sld [smem:[#allocation0]]
  $region26: #{my_module_forward.1} parent=0
    _
  %s7 = ssub.s32 1, %s5
  %s8 = scalar_select 0, %s7, %s5
  %9 = sst [smem:[#allocation4]] %s3
  // Predicated region
  $region2: #{my_module_forward.1} parent=0 // pred_check
    _
  $region3: #{my_module_forward.1} parent=0 // pred_check_branch
    %11 = sbr.rel (0) target = $region5
  $region4: #{my_module_forward.1} parent=0 // pred_region
    _
  $region5: #{my_module_forward.1} parent=0 // pred_fallthru
    _
  // Predicated region
  $region6: #{my_module_forward.1} parent=0 // pred_check
    _
  $region7: #{my_module_forward.1} parent=0 // pred_check_branch
    %13 = sbr.rel (0) target = $region9
  $region8: #{my_module_forward.1} parent=0 // pred_region
    _
  $region9: #{my_module_forward.1} parent=0 // pred_fallthru
    _
  // Predicated region
  $region10: #{my_module_forward.1} parent=0 // pred_check
    _
  $region11: #{my_module_forward.1} parent=0 // pred_check_branch
    %15 = sbr.rel (0) target = $region13
  $region12: #{my_module_forward.1} parent=0 // pred_region
    _
  $region13: #{my_module_forward.1} parent=0 // pred_fallthru
    _
  // Predicated region
  $region14: #{my_module_forward.1} parent=0 // pred_check
    _
  $region15: #{my_module_forward.1} parent=0 // pred_check_branch
    %17 = sbr.rel (0) target = $region17
  $region16: #{my_module_forward.1} parent=0 // pred_region
    _
  $region17: #{my_module_forward.1} parent=0 // pred_fallthru
    _
  %v18 = vld [vmem:[%s0] sm:$0xff]
  %v19 = vld [vmem:[%s0 + $0x8] sm:$0xff]
  %v20 = vld [vmem:[%s0 + $0x10] sm:$0x3]
  %v21 = vld [vmem:[%s0 + $0x18] sm:$0x3]
  %s22 = scalar_lea.vmem %s0, 32
  %v23 = vld [vmem:[%s22] sm:$0xff]
  %v24 = vld [vmem:[%s22 + $0x8] sm:$0xff]
  %v25 = vld [vmem:[%s22 + $0x10] sm:$0x3]
  %v26 = vld [vmem:[%s22 + $0x18] sm:$0x3]
  %27 = vst [vmem:[#allocation2] sm:$0xff] 0.0
  %28 = vst [vmem:[#allocation2 + $0x8] sm:$0xff] 0.0
  %29 = vst [vmem:[#allocation2 + $0x10] sm:$0xff] 0.0
  %30 = vst [vmem:[#allocation2 + $0x18] sm:$0xff] 0.0
  %31 = vst [vmem:[#allocation2 + $0x20] sm:$0xff] 0.0
  %32 = vst [vmem:[#allocation2 + $0x28] sm:$0xff] 0.0
  %33 = vst [vmem:[#allocation2 + $0x30] sm:$0xff] 0.0
  %34 = vst [vmem:[#allocation2 + $0x38] sm:$0xff] 0.0
  %35 = vst [vmem:[#allocation2 + $0x40] sm:$0xff] 0.0
  %36 = vst [vmem:[#allocation2 + $0x48] sm:$0xff] 0.0
  %37 = vst [vmem:[#allocation2 + $0x50] sm:$0xff] 0.0
  %38 = vst [vmem:[#allocation2 + $0x58] sm:$0xff] 0.0
  %39 = vst [vmem:[#allocation2 + $0x60] sm:$0xff] 0.0
  %40 = vst [vmem:[#allocation2 + $0x68] sm:$0xff] 0.0
  %41 = vst [vmem:[#allocation2 + $0x70] sm:$0xff] 0.0
  %42 = vst [vmem:[#allocation2 + $0x78] sm:$0xff] 0.0
  %43 = vst [vmem:[#allocation2 + $0x80] sm:$0xff] 0.0
  %44 = vst [vmem:[#allocation2 + $0x88] sm:$0xff] 0.0
  %45 = vst [vmem:[#allocation2 + $0x90] sm:$0xff] 0.0
  %46 = vst [vmem:[#allocation2 + $0x98] sm:$0xff] 0.0
  %47 = vst [vmem:[#allocation2 + $0xa0] sm:$0xff] 0.0
  %48 = vst [vmem:[#allocation2 + $0xa8] sm:$0xff] 0.0
  %49 = vst [vmem:[#allocation2 + $0xb0] sm:$0xff] 0.0
  %50 = vst [vmem:[#allocation2 + $0xb8] sm:$0xff] 0.0
  %51 = vst [vmem:[#allocation2 + $0xc0] sm:$0xff] 0.0
  %52 = vst [vmem:[#allocation2 + $0xc8] sm:$0xff] 0.0
  %53 = vst [vmem:[#allocation2 + $0xd0] sm:$0xff] 0.0
  %54 = vst [vmem:[#allocation2 + $0xd8] sm:$0xff] 0.0
  %55 = vst [vmem:[#allocation2 + $0xe0] sm:$0xff] 0.0
  %56 = vst [vmem:[#allocation2 + $0xe8] sm:$0xff] 0.0
  %57 = vst [vmem:[#allocation2 + $0xf0] sm:$0xff] 0.0
  %58 = vst [vmem:[#allocation2 + $0xf8] sm:$0xff] 0.0
  %59 = vst [vmem:[#allocation2 + $0x100] sm:$0xff] 0.0
  %60 = vst [vmem:[#allocation2 + $0x108] sm:$0xff] 0.0
  %61 = vst [vmem:[#allocation2 + $0x110] sm:$0xff] 0.0
  %62 = vst [vmem:[#allocation2 + $0x118] sm:$0xff] 0.0
  %63 = vst [vmem:[#allocation2 + $0x120] sm:$0xff] 0.0
  %64 = vst [vmem:[#allocation2 + $0x128] sm:$0xff] 0.0
  %65 = vst [vmem:[#allocation2 + $0x130] sm:$0xff] 0.0
  %66 = vst [vmem:[#allocation2 + $0x138] sm:$0xff] 0.0
  %67 = vst [vmem:[#allocation2 + $0x140] sm:$0xff] 0.0
  %68 = vst [vmem:[#allocation2 + $0x148] sm:$0xff] 0.0
  %69 = vst [vmem:[#allocation2 + $0x150] sm:$0xff] 0.0
  %70 = vst [vmem:[#allocation2 + $0x158] sm:$0xff] 0.0
  %71 = vst [vmem:[#allocation2 + $0x160] sm:$0xff] 0.0
  %72 = vst [vmem:[#allocation2 + $0x168] sm:$0xff] 0.0
  %73 = vst [vmem:[#allocation2 + $0x170] sm:$0xff] 0.0
  %74 = vst [vmem:[#allocation2 + $0x178] sm:$0xff] 0.0
  %75 = vst [vmem:[#allocation2 + $0x180] sm:$0xff] 0.0
  %76 = vst [vmem:[#allocation2 + $0x188] sm:$0xff] 0.0
  %77 = vst [vmem:[#allocation2 + $0x190] sm:$0xff] 0.0
  %78 = vst [vmem:[#allocation2 + $0x198] sm:$0xff] 0.0
  %79 = vst [vmem:[#allocation2 + $0x1a0] sm:$0xff] 0.0
  %80 = vst [vmem:[#allocation2 + $0x1a8] sm:$0xff] 0.0
  %81 = vst [vmem:[#allocation2 + $0x1b0] sm:$0xff] 0.0
  %82 = vst [vmem:[#allocation2 + $0x1b8] sm:$0xff] 0.0
  %83 = vst [vmem:[#allocation2 + $0x1c0] sm:$0xff] 0.0
  %84 = vst [vmem:[#allocation2 + $0x1c8] sm:$0xff] 0.0
  %85 = vst [vmem:[#allocation2 + $0x1d0] sm:$0xff] 0.0
  %86 = vst [vmem:[#allocation2 + $0x1d8] sm:$0xff] 0.0
  %87 = vst [vmem:[#allocation2 + $0x1e0] sm:$0xff] 0.0
  %88 = vst [vmem:[#allocation2 + $0x1e8] sm:$0xff] 0.0
  %89 = vst [vmem:[#allocation2 + $0x1f0] sm:$0xff] 0.0
  %90 = vst [vmem:[#allocation2 + $0x1f8] sm:$0xff] 0.0
  %91 = vst [vmem:[#allocation2 + $0x200] sm:$0xff] 0.0
  %92 = vst [vmem:[#allocation2 + $0x208] sm:$0xff] 0.0
  %93 = vst [vmem:[#allocation2 + $0x210] sm:$0xff] 0.0
  %94 = vst [vmem:[#allocation2 + $0x218] sm:$0xff] 0.0
  %95 = vst [vmem:[#allocation2 + $0x220] sm:$0xff] 0.0
  %96 = vst [vmem:[#allocation2 + $0x228] sm:$0xff] 0.0
  %97 = vst [vmem:[#allocation2 + $0x230] sm:$0xff] 0.0
  %98 = vst [vmem:[#allocation2 + $0x238] sm:$0xff] 0.0
  %99 = vst [vmem:[#allocation2] sm:$0xff] %v18
  %100 = vst [vmem:[#allocation2 + $0x8] sm:$0xff] %v19
  %101 = vst [vmem:[#allocation2 + $0x10] sm:$0xff] %v23
  %102 = vst [vmem:[#allocation2 + $0x18] sm:$0xff] %v24
  %103 = vst [vmem:[#allocation2 + $0x20] sm:$0x3] %v20
  %104 = vst [vmem:[#allocation2 + $0x28] sm:$0x3] %v21
  %105 = vst [vmem:[#allocation2 + $0x30] sm:$0x3] %v25
  %106 = vst [vmem:[#allocation2 + $0x38] sm:$0x3] %v26
  %107 = vrot.lane.b32.xlu0 %v18, 127
  %v108 = vpop.permute.xlu0 %107
  %109 = vrot.lane.b32.xlu0 %v20, 127
  %v110 = vpop.permute.xlu0 %109
  %111 = vrot.lane.b32.xlu0 %v19, 127
  %v112 = vpop.permute.xlu0 %111
  %113 = vrot.lane.b32.xlu0 %v21, 127
  %v114 = vpop.permute.xlu0 %113
  %115 = vrot.lane.b32.xlu0 %v23, 127
  %v116 = vpop.permute.xlu0 %115
  %117 = vrot.lane.b32.xlu0 %v25, 127
  %v118 = vpop.permute.xlu0 %117
  %119 = vrot.lane.b32.xlu0 %v24, 127
  %v120 = vpop.permute.xlu0 %119
  %121 = vrot.lane.b32.xlu0 %v26, 127
  %v122 = vpop.permute.xlu0 %121
  %v123 = vlaneseq
  %v124 = vand.u32 %v123, 127
  %vm125 = vcmp.lt.s32.totalorder %v124, 127
  %v126 = vsel %vm125, %v116, %v120
  %v127 = vsel %vm125, %v118, %v122
  %v128 = vsel %vm125, %v112, %v116
  %v129 = vsel %vm125, %v114, %v118
  %v130 = vsel %vm125, %v108, %v112
  %v131 = vsel %vm125, %v110, %v114
  %v132 = vsel %vm125, %v120, %v108
  %v133 = vsel %vm125, %v122, %v110
  %134 = vst [vmem:[#allocation2 + $0x40] sm:$0xff] %v130
  %135 = vst [vmem:[#allocation2 + $0x48] sm:$0xff] %v128
  %136 = vst [vmem:[#allocation2 + $0x50] sm:$0xff] %v126
  %137 = vst [vmem:[#allocation2 + $0x58] sm:$0xff] %v132
  %138 = vst [vmem:[#allocation2 + $0x60] sm:$0x3] %v131
  %139 = vst [vmem:[#allocation2 + $0x68] sm:$0x3] %v129
  %140 = vst [vmem:[#allocation2 + $0x70] sm:$0x3] %v127
  %141 = vst [vmem:[#allocation2 + $0x78] sm:$0x3] %v133
  %142 = vrot.lane.b32.xlu0 %v18, 126
  %v143 = vpop.permute.xlu0 %142
  %144 = vrot.lane.b32.xlu0 %v20, 126
  %v145 = vpop.permute.xlu0 %144
  %146 = vrot.lane.b32.xlu0 %v19, 126
  %v147 = vpop.permute.xlu0 %146
  %148 = vrot.lane.b32.xlu0 %v21, 126
  %v149 = vpop.permute.xlu0 %148
  %150 = vrot.lane.b32.xlu0 %v23, 126
  %v151 = vpop.permute.xlu0 %150
  %152 = vrot.lane.b32.xlu0 %v25, 126
  %v153 = vpop.permute.xlu0 %152
  %154 = vrot.lane.b32.xlu0 %v24, 126
  %v155 = vpop.permute.xlu0 %154
  %156 = vrot.lane.b32.xlu0 %v26, 126
  %v157 = vpop.permute.xlu0 %156
  %vm158 = vcmp.lt.s32.totalorder %v124, 126
  %v159 = vsel %vm158, %v151, %v155
  %v160 = vsel %vm158, %v153, %v157
  %v161 = vsel %vm158, %v147, %v151
  %v162 = vsel %vm158, %v149, %v153
  %v163 = vsel %vm158, %v143, %v147
  %v164 = vsel %vm158, %v145, %v149
  %v165 = vsel %vm158, %v155, %v143
  %v166 = vsel %vm158, %v157, %v145
  %167 = vst [vmem:[#allocation2 + $0x80] sm:$0xff] %v163
  %168 = vst [vmem:[#allocation2 + $0x88] sm:$0xff] %v161
  %169 = vst [vmem:[#allocation2 + $0x90] sm:$0xff] %v159
  %170 = vst [vmem:[#allocation2 + $0x98] sm:$0xff] %v165
  %171 = vst [vmem:[#allocation2 + $0xa0] sm:$0x3] %v164
  %172 = vst [vmem:[#allocation2 + $0xa8] sm:$0x3] %v162
  %173 = vst [vmem:[#allocation2 + $0xb0] sm:$0x3] %v160
  %174 = vst [vmem:[#allocation2 + $0xb8] sm:$0x3] %v166
  %175 = vrot.lane.b32.xlu0 %v18, 112
  %v176 = vpop.permute.xlu0 %175
  %177 = vrot.lane.b32.xlu0 %v20, 112
  %v178 = vpop.permute.xlu0 %177
  %179 = vrot.lane.b32.xlu0 %v19, 112
  %v180 = vpop.permute.xlu0 %179
  %181 = vrot.lane.b32.xlu0 %v21, 112
  %v182 = vpop.permute.xlu0 %181
  %183 = vrot.lane.b32.xlu0 %v23, 112
  %v184 = vpop.permute.xlu0 %183
  %185 = vrot.lane.b32.xlu0 %v25, 112
  %v186 = vpop.permute.xlu0 %185
  %187 = vrot.lane.b32.xlu0 %v24, 112
  %v188 = vpop.permute.xlu0 %187
  %189 = vrot.lane.b32.xlu0 %v26, 112
  %v190 = vpop.permute.xlu0 %189
  %vm191 = vcmp.lt.s32.totalorder %v124, 112
  %v192 = vsel %vm191, %v184, %v188
  %v193 = vsel %vm191, %v186, %v190
  %v194 = vsel %vm191, %v180, %v184
  %v195 = vsel %vm191, %v182, %v186
  %v196 = vsel %vm191, %v176, %v180
  %v197 = vsel %vm191, %v178, %v182
  %v198 = vsel %vm191, %v188, %v176
  %v199 = vsel %vm191, %v190, %v178
  %200 = vst [vmem:[#allocation2 + $0xc0] sm:$0xff] %v196
  %201 = vst [vmem:[#allocation2 + $0xc8] sm:$0xff] %v194
  %202 = vst [vmem:[#allocation2 + $0xd0] sm:$0xff] %v192
  %203 = vst [vmem:[#allocation2 + $0xd8] sm:$0xff] %v198
  %204 = vst [vmem:[#allocation2 + $0xe0] sm:$0x3] %v197
  %205 = vst [vmem:[#allocation2 + $0xe8] sm:$0x3] %v195
  %206 = vst [vmem:[#allocation2 + $0xf0] sm:$0x3] %v193
  %207 = vst [vmem:[#allocation2 + $0xf8] sm:$0x3] %v199
  %208 = vrot.lane.b32.xlu0 %v18, 111
  %v209 = vpop.permute.xlu0 %208
  %210 = vrot.lane.b32.xlu0 %v20, 111
  %v211 = vpop.permute.xlu0 %210
  %212 = vrot.lane.b32.xlu0 %v19, 111
  %v213 = vpop.permute.xlu0 %212
  %214 = vrot.lane.b32.xlu0 %v21, 111
  %v215 = vpop.permute.xlu0 %214
  %216 = vrot.lane.b32.xlu0 %v23, 111
  %v217 = vpop.permute.xlu0 %216
  %218 = vrot.lane.b32.xlu0 %v25, 111
  %v219 = vpop.permute.xlu0 %218
  %220 = vrot.lane.b32.xlu0 %v24, 111
  %v221 = vpop.permute.xlu0 %220
  %222 = vrot.lane.b32.xlu0 %v26, 111
  %v223 = vpop.permute.xlu0 %222
  %vm224 = vcmp.lt.s32.totalorder %v124, 111
  %v225 = vsel %vm224, %v217, %v221
  %v226 = vsel %vm224, %v219, %v223
  %v227 = vsel %vm224, %v213, %v217
  %v228 = vsel %vm224, %v215, %v219
  %v229 = vsel %vm224, %v209, %v213
  %v230 = vsel %vm224, %v211, %v215
  %v231 = vsel %vm224, %v221, %v209
  %v232 = vsel %vm224, %v223, %v211
  %233 = vst [vmem:[#allocation2 + $0x100] sm:$0xff] %v229
  %234 = vst [vmem:[#allocation2 + $0x108] sm:$0xff] %v227
  %235 = vst [vmem:[#allocation2 + $0x110] sm:$0xff] %v225
  %236 = vst [vmem:[#allocation2 + $0x118] sm:$0xff] %v231
  %237 = vst [vmem:[#allocation2 + $0x120] sm:$0x3] %v230
  %238 = vst [vmem:[#allocation2 + $0x128] sm:$0x3] %v228
  %239 = vst [vmem:[#allocation2 + $0x130] sm:$0x3] %v226
  %240 = vst [vmem:[#allocation2 + $0x138] sm:$0x3] %v232
  %241 = vrot.lane.b32.xlu0 %v18, 110
  %v242 = vpop.permute.xlu0 %241
  %243 = vrot.lane.b32.xlu0 %v20, 110
  %v244 = vpop.permute.xlu0 %243
  %245 = vrot.lane.b32.xlu0 %v19, 110
  %v246 = vpop.permute.xlu0 %245
  %247 = vrot.lane.b32.xlu0 %v21, 110
  %v248 = vpop.permute.xlu0 %247
  %249 = vrot.lane.b32.xlu0 %v23, 110
  %v250 = vpop.permute.xlu0 %249
  %251 = vrot.lane.b32.xlu0 %v25, 110
  %v252 = vpop.permute.xlu0 %251
  %253 = vrot.lane.b32.xlu0 %v24, 110
  %v254 = vpop.permute.xlu0 %253
  %255 = vrot.lane.b32.xlu0 %v26, 110
  %v256 = vpop.permute.xlu0 %255
  %vm257 = vcmp.lt.s32.totalorder %v124, 110
  %v258 = vsel %vm257, %v250, %v254
  %v259 = vsel %vm257, %v252, %v256
  %v260 = vsel %vm257, %v246, %v250
  %v261 = vsel %vm257, %v248, %v252
  %v262 = vsel %vm257, %v242, %v246
  %v263 = vsel %vm257, %v244, %v248
  %v264 = vsel %vm257, %v254, %v242
  %v265 = vsel %vm257, %v256, %v244
  %266 = vst [vmem:[#allocation2 + $0x140] sm:$0xff] %v262
  %267 = vst [vmem:[#allocation2 + $0x148] sm:$0xff] %v260
  %268 = vst [vmem:[#allocation2 + $0x150] sm:$0xff] %v258
  %269 = vst [vmem:[#allocation2 + $0x158] sm:$0xff] %v264
  %270 = vst [vmem:[#allocation2 + $0x160] sm:$0x3] %v263
  %271 = vst [vmem:[#allocation2 + $0x168] sm:$0x3] %v261
  %272 = vst [vmem:[#allocation2 + $0x170] sm:$0x3] %v259
  %273 = vst [vmem:[#allocation2 + $0x178] sm:$0x3] %v265
  %274 = vrot.lane.b32.xlu0 %v18, 96
  %v275 = vpop.permute.xlu0 %274
  %276 = vrot.lane.b32.xlu0 %v20, 96
  %v277 = vpop.permute.xlu0 %276
  %278 = vrot.lane.b32.xlu0 %v19, 96
  %v279 = vpop.permute.xlu0 %278
  %280 = vrot.lane.b32.xlu0 %v21, 96
  %v281 = vpop.permute.xlu0 %280
  %282 = vrot.lane.b32.xlu0 %v23, 96
  %v283 = vpop.permute.xlu0 %282
  %284 = vrot.lane.b32.xlu0 %v25, 96
  %v285 = vpop.permute.xlu0 %284
  %286 = vrot.lane.b32.xlu0 %v24, 96
  %v287 = vpop.permute.xlu0 %286
  %288 = vrot.lane.b32.xlu0 %v26, 96
  %v289 = vpop.permute.xlu0 %288
  %vm290 = vcmp.lt.s32.totalorder %v124, 96
  %v291 = vsel %vm290, %v283, %v287
  %v292 = vsel %vm290, %v285, %v289
  %v293 = vsel %vm290, %v279, %v283
  %v294 = vsel %vm290, %v281, %v285
  %v295 = vsel %vm290, %v275, %v279
  %v296 = vsel %vm290, %v277, %v281
  %v297 = vsel %vm290, %v287, %v275
  %v298 = vsel %vm290, %v289, %v277
  %299 = vst [vmem:[#allocation2 + $0x180] sm:$0xff] %v295
  %300 = vst [vmem:[#allocation2 + $0x188] sm:$0xff] %v293
  %301 = vst [vmem:[#allocation2 + $0x190] sm:$0xff] %v291
  %302 = vst [vmem:[#allocation2 + $0x198] sm:$0xff] %v297
  %303 = vst [vmem:[#allocation2 + $0x1a0] sm:$0x3] %v296
  %304 = vst [vmem:[#allocation2 + $0x1a8] sm:$0x3] %v294
  %305 = vst [vmem:[#allocation2 + $0x1b0] sm:$0x3] %v292
  %306 = vst [vmem:[#allocation2 + $0x1b8] sm:$0x3] %v298
  %307 = vrot.lane.b32.xlu0 %v18, 95
  %v308 = vpop.permute.xlu0 %307
  %309 = vrot.lane.b32.xlu0 %v20, 95
  %v310 = vpop.permute.xlu0 %309
  %311 = vrot.lane.b32.xlu0 %v19, 95
  %v312 = vpop.permute.xlu0 %311
  %313 = vrot.lane.b32.xlu0 %v21, 95
  %v314 = vpop.permute.xlu0 %313
  %315 = vrot.lane.b32.xlu0 %v23, 95
  %v316 = vpop.permute.xlu0 %315
  %317 = vrot.lane.b32.xlu0 %v25, 95
  %v318 = vpop.permute.xlu0 %317
  %319 = vrot.lane.b32.xlu0 %v24, 95
  %v320 = vpop.permute.xlu0 %319
  %321 = vrot.lane.b32.xlu0 %v26, 95
  %v322 = vpop.permute.xlu0 %321
  %vm323 = vcmp.lt.s32.totalorder %v124, 95
  %v324 = vsel %vm323, %v316, %v320
  %v325 = vsel %vm323, %v318, %v322
  %v326 = vsel %vm323, %v312, %v316
  %v327 = vsel %vm323, %v314, %v318
  %v328 = vsel %vm323, %v308, %v312
  %v329 = vsel %vm323, %v310, %v314
  %v330 = vsel %vm323, %v320, %v308
  %v331 = vsel %vm323, %v322, %v310
  %332 = vst [vmem:[#allocation2 + $0x1c0] sm:$0xff] %v328
  %333 = vst [vmem:[#allocation2 + $0x1c8] sm:$0xff] %v326
  %334 = vst [vmem:[#allocation2 + $0x1d0] sm:$0xff] %v324
  %335 = vst [vmem:[#allocation2 + $0x1d8] sm:$0xff] %v330
  %336 = vst [vmem:[#allocation2 + $0x1e0] sm:$0x3] %v329
  %337 = vst [vmem:[#allocation2 + $0x1e8] sm:$0x3] %v327
  %338 = vst [vmem:[#allocation2 + $0x1f0] sm:$0x3] %v325
  %339 = vst [vmem:[#allocation2 + $0x1f8] sm:$0x3] %v331
  %340 = vrot.lane.b32.xlu0 %v18, 94
  %v341 = vpop.permute.xlu0 %340
  %342 = vrot.lane.b32.xlu0 %v20, 94
  %v343 = vpop.permute.xlu0 %342
  %344 = vrot.lane.b32.xlu0 %v19, 94
  %v345 = vpop.permute.xlu0 %344
  %346 = vrot.lane.b32.xlu0 %v21, 94
  %v347 = vpop.permute.xlu0 %346
  %348 = vrot.lane.b32.xlu0 %v23, 94
  %v349 = vpop.permute.xlu0 %348
  %350 = vrot.lane.b32.xlu0 %v25, 94
  %v351 = vpop.permute.xlu0 %350
  %352 = vrot.lane.b32.xlu0 %v24, 94
  %v353 = vpop.permute.xlu0 %352
  %354 = vrot.lane.b32.xlu0 %v26, 94
  %v355 = vpop.permute.xlu0 %354
  %vm356 = vcmp.lt.s32.totalorder %v124, 94
  %v357 = vsel %vm356, %v349, %v353
  %v358 = vsel %vm356, %v351, %v355
  %v359 = vsel %vm356, %v345, %v349
  %v360 = vsel %vm356, %v347, %v351
  %v361 = vsel %vm356, %v341, %v345
  %v362 = vsel %vm356, %v343, %v347
  %v363 = vsel %vm356, %v353, %v341
  %v364 = vsel %vm356, %v355, %v343
  %365 = vst [vmem:[#allocation2 + $0x200] sm:$0xff] %v361
  %366 = vst [vmem:[#allocation2 + $0x208] sm:$0xff] %v359
  %367 = vst [vmem:[#allocation2 + $0x210] sm:$0xff] %v357
  %368 = vst [vmem:[#allocation2 + $0x218] sm:$0xff] %v363
  %369 = vst [vmem:[#allocation2 + $0x220] sm:$0x3] %v362
  %370 = vst [vmem:[#allocation2 + $0x228] sm:$0x3] %v360
  %371 = vst [vmem:[#allocation2 + $0x230] sm:$0x3] %v358
  %372 = vst [vmem:[#allocation2 + $0x238] sm:$0x3] %v364
  %v373 = vld [vmem:[%s1] sm:$0xff]
  %v374 = vld [vmem:[%s1 + $0x8] sm:$0xff]
  %v375 = vld [vmem:[%s1 + $0x10] sm:$0x3]
  %v376 = vld [vmem:[%s1 + $0x18] sm:$0x3]
  %v377 = vld [vmem:[#allocation2] sm:$0xff]
  %v378 = vld [vmem:[#allocation2 + $0x8] sm:$0xff]
  %v379 = vld [vmem:[#allocation2 + $0x10] sm:$0xff]
  %v380 = vld [vmem:[#allocation2 + $0x18] sm:$0xff]
  %v381 = vld [vmem:[#allocation2 + $0x20] sm:$0xff]
  %v382 = vld [vmem:[#allocation2 + $0x28] sm:$0xff]
  %v383 = vld [vmem:[#allocation2 + $0x30] sm:$0xff]
  %v384 = vld [vmem:[#allocation2 + $0x38] sm:$0xff]
  %v385 = vld [vmem:[#allocation2 + $0x40] sm:$0xff]
  %v386 = vld [vmem:[#allocation2 + $0x48] sm:$0xff]
  %v387 = vld [vmem:[#allocation2 + $0x50] sm:$0xff]
  %v388 = vld [vmem:[#allocation2 + $0x58] sm:$0xff]
  %v389 = vld [vmem:[#allocation2 + $0x60] sm:$0xff]
  %v390 = vld [vmem:[#allocation2 + $0x68] sm:$0xff]
  %v391 = vld [vmem:[#allocation2 + $0x70] sm:$0xff]
  %v392 = vld [vmem:[#allocation2 + $0x78] sm:$0xff]
  %v393 = vld [vmem:[#allocation2 + $0x80] sm:$0xff]
  %v394 = vld [vmem:[#allocation2 + $0x88] sm:$0xff]
  %v395 = vld [vmem:[#allocation2 + $0x90] sm:$0xff]
  %v396 = vld [vmem:[#allocation2 + $0x98] sm:$0xff]
  %v397 = vld [vmem:[#allocation2 + $0xa0] sm:$0xff]
  %v398 = vld [vmem:[#allocation2 + $0xa8] sm:$0xff]
  %v399 = vld [vmem:[#allocation2 + $0xb0] sm:$0xff]
  %v400 = vld [vmem:[#allocation2 + $0xb8] sm:$0xff]
  %v401 = vld [vmem:[#allocation2 + $0xc0] sm:$0xff]
  %v402 = vld [vmem:[#allocation2 + $0xc8] sm:$0xff]
  %v403 = vld [vmem:[#allocation2 + $0xd0] sm:$0xff]
  %v404 = vld [vmem:[#allocation2 + $0xd8] sm:$0xff]
  %v405 = vld [vmem:[#allocation2 + $0xe0] sm:$0xff]
  %v406 = vld [vmem:[#allocation2 + $0xe8] sm:$0xff]
  %v407 = vld [vmem:[#allocation2 + $0xf0] sm:$0xff]
  %v408 = vld [vmem:[#allocation2 + $0xf8] sm:$0xff]
  %v409 = vld [vmem:[#allocation2 + $0x100] sm:$0xff]
  %v410 = vld [vmem:[#allocation2 + $0x108] sm:$0xff]
  %v411 = vld [vmem:[#allocation2 + $0x110] sm:$0xff]
  %v412 = vld [vmem:[#allocation2 + $0x118] sm:$0xff]
  %v413 = vld [vmem:[#allocation2 + $0x120] sm:$0xff]
  %v414 = vld [vmem:[#allocation2 + $0x128] sm:$0xff]
  %v415 = vld [vmem:[#allocation2 + $0x130] sm:$0xff]
  %v416 = vld [vmem:[#allocation2 + $0x138] sm:$0xff]
  %v417 = vld [vmem:[#allocation2 + $0x140] sm:$0xff]
  %v418 = vld [vmem:[#allocation2 + $0x148] sm:$0xff]
  %v419 = vld [vmem:[#allocation2 + $0x150] sm:$0xff]
  %v420 = vld [vmem:[#allocation2 + $0x158] sm:$0xff]
  %v421 = vld [vmem:[#allocation2 + $0x160] sm:$0xff]
  %v422 = vld [vmem:[#allocation2 + $0x168] sm:$0xff]
  %v423 = vld [vmem:[#allocation2 + $0x170] sm:$0xff]
  %v424 = vld [vmem:[#allocation2 + $0x178] sm:$0xff]
  %v425 = vld [vmem:[#allocation2 + $0x180] sm:$0xff]
  %v426 = vld [vmem:[#allocation2 + $0x188] sm:$0xff]
  %v427 = vld [vmem:[#allocation2 + $0x190] sm:$0xff]
  %v428 = vld [vmem:[#allocation2 + $0x198] sm:$0xff]
  %v429 = vld [vmem:[#allocation2 + $0x1a0] sm:$0xff]
  %v430 = vld [vmem:[#allocation2 + $0x1a8] sm:$0xff]
  %v431 = vld [vmem:[#allocation2 + $0x1b0] sm:$0xff]
  %v432 = vld [vmem:[#allocation2 + $0x1b8] sm:$0xff]
  %v433 = vld [vmem:[#allocation2 + $0x1c0] sm:$0xff]
  %v434 = vld [vmem:[#allocation2 + $0x1c8] sm:$0xff]
  %v435 = vld [vmem:[#allocation2 + $0x1d0] sm:$0xff]
  %v436 = vld [vmem:[#allocation2 + $0x1d8] sm:$0xff]
  %v437 = vld [vmem:[#allocation2 + $0x1e0] sm:$0xff]
  %v438 = vld [vmem:[#allocation2 + $0x1e8] sm:$0xff]
  %v439 = vld [vmem:[#allocation2 + $0x1f0] sm:$0xff]
  %v440 = vld [vmem:[#allocation2 + $0x1f8] sm:$0xff]
  %v441 = vld [vmem:[#allocation2 + $0x200] sm:$0xff]
  %v442 = vld [vmem:[#allocation2 + $0x208] sm:$0xff]
  %v443 = vld [vmem:[#allocation2 + $0x210] sm:$0xff]
  %v444 = vld [vmem:[#allocation2 + $0x218] sm:$0xff]
  %v445 = vld [vmem:[#allocation2 + $0x220] sm:$0xff]
  %v446 = vld [vmem:[#allocation2 + $0x228] sm:$0xff]
  %v447 = vld [vmem:[#allocation2 + $0x230] sm:$0xff]
  %v448 = vld [vmem:[#allocation2 + $0x238] sm:$0xff]
  %v449 = vld [vmem:[%s2] sm:$0xff]
  %v450 = vld [vmem:[%s2 + $0x8] sm:$0x3]
  %452 = vset.pattern.permute.xlu0 0
  %453 = vperm.xlu0 %452, %v449
  %v454 = vpop.permute.xlu0 %453
  %457 = vset.pattern.permute.xlu0 0
  %458 = vperm.xlu0 %457, %v450
  %v459 = vpop.permute.xlu0 %458
  %vm461 = vcmask 130048
  %v463 = vsel %vm461, %v374, 0
  %v466 = vsel %vm461, %v376, 0
  %468 = vmatprep.subr.mxu0 %v378
  %469 = vmatpush1.msra.mxu0 %v377
  %470 = vmatprep.subr.mxu0 %v382
  %471 = vmatpush1.msra.mxu0 %v381
  %472 = vmatprep.subr.mxu0 %v386
  %473 = vmatpush1.msra.mxu0 %v385
  %474 = vmatprep.subr.mxu0 %v390
  %475 = vmatpush1.msra.mxu0 %v389
  %476 = vmatprep.subr.mxu0 %v394
  %477 = vmatpush1.msra.mxu0 %v393
  %478 = vmatprep.subr.mxu0 %v398
  %479 = vmatpush1.msra.mxu0 %v397
  %480 = vmatprep.subr.mxu0 %v402
  %481 = vmatpush1.msra.mxu0 %v401
  %482 = vmatprep.subr.mxu0 %v406
  %483 = vmatpush1.msra.mxu0 %v405
  %484 = vmatprep.subr.mxu0 %v410
  %485 = vmatpush1.msra.mxu0 %v409
  %486 = vmatprep.subr.mxu0 %v414
  %487 = vmatpush1.msra.mxu0 %v413
  %488 = vmatprep.subr.mxu0 %v418
  %489 = vmatpush1.msra.mxu0 %v417
  %490 = vmatprep.subr.mxu0 %v422
  %491 = vmatpush1.msra.mxu0 %v421
  %492 = vmatprep.subr.mxu0 %v426
  %493 = vmatpush1.msra.mxu0 %v425
  %494 = vmatprep.subr.mxu0 %v430
  %495 = vmatpush1.msra.mxu0 %v429
  %496 = vmatprep.subr.mxu0 %v434
  %497 = vmatpush1.msra.mxu0 %v433
  %498 = vmatprep.subr.mxu0 %v438
  %499 = vmatpush1.msra.mxu0 %v437
  %500 = vmatprep.subr.mxu0 %v442
  %501 = vmatpush1.msra.mxu0 %v441
  %502 = vmatprep.subr.mxu0 %v446
  %503 = vmatpush1.msra.mxu0 %v445
  %504 = vmatprep.subr.mxu0 0.0
  %505 = vmatpush1.msra.mxu0 0.0
  %506 = vmatprep.subr.mxu0 0.0
  %507 = vmatpush1.msra.mxu0 0.0
  %508 = vmatprep.subr.mxu0 0.0
  %509 = vmatpush1.msra.mxu0 0.0
  %510 = vmatprep.subr.mxu0 0.0
  %511 = vmatpush1.msra.mxu0 0.0
  %512 = vmatprep.subr.mxu0 0.0
  %513 = vmatpush1.msra.mxu0 0.0
  %514 = vmatprep.subr.mxu0 0.0
  %515 = vmatpush1.msra.mxu0 0.0
  %516 = vmatprep.subr.mxu0 0.0
  %517 = vmatpush1.msra.mxu0 0.0
  %518 = vmatprep.subr.mxu0 0.0
  %519 = vmatpush1.msra.mxu0 0.0
  %520 = vmatprep.subr.mxu0 0.0
  %521 = vmatpush1.msra.mxu0 0.0
  %522 = vmatprep.subr.mxu0 0.0
  %523 = vmatpush1.msra.mxu0 0.0
  %524 = vmatprep.subr.mxu0 0.0
  %525 = vmatpush1.msra.mxu0 0.0
  %526 = vmatprep.subr.mxu0 0.0
  %527 = vmatpush1.msra.mxu0 0.0
  %528 = vmatprep.subr.mxu0 0.0
  %529 = vmatpush1.msra.mxu0 0.0
  %530 = vmatprep.subr.mxu0 0.0
  %531 = vmatpush1.msra.mxu0 0.0
  %532 = vmatprep.mubr.f32.mxu0 %v463
  %533 = vmatmul.mubr.f32.gmra.mrb[0].mxu0 %v373
  %v534 = vpop.f32.mrb[0].mxu0
  %v535 = vadd.f32 %v454, %v534
  %v536 = vpop.f32.mrb[0].mxu0
  %v537 = vadd.f32 %v454, %v536
  %538 = vmatprep.mubr.f32.mxu0 %v466
  %539 = vmatmul.mubr.f32.gmra.mrb[0].mxu0 %v375
  %v540 = vpop.f32.mrb[0].mxu0
  %v541 = vadd.f32 %v459, %v540
  %v542 = vpop.f32.mrb[0].mxu0
  %v543 = vadd.f32 %v459, %v542
  %544 = vdwg.mxu0
  %545 = vmatprep.subr.mxu0 %v380
  %546 = vmatpush1.msra.mxu0 %v379
  %547 = vmatprep.subr.mxu0 %v384
  %548 = vmatpush1.msra.mxu0 %v383
  %549 = vmatprep.subr.mxu0 %v388
  %550 = vmatpush1.msra.mxu0 %v387
  %551 = vmatprep.subr.mxu0 %v392
  %552 = vmatpush1.msra.mxu0 %v391
  %553 = vmatprep.subr.mxu0 %v396
  %554 = vmatpush1.msra.mxu0 %v395
  %555 = vmatprep.subr.mxu0 %v400
  %556 = vmatpush1.msra.mxu0 %v399
  %557 = vmatprep.subr.mxu0 %v404
  %558 = vmatpush1.msra.mxu0 %v403
  %559 = vmatprep.subr.mxu0 %v408
  %560 = vmatpush1.msra.mxu0 %v407
  %561 = vmatprep.subr.mxu0 %v412
  %562 = vmatpush1.msra.mxu0 %v411
  %563 = vmatprep.subr.mxu0 %v416
  %564 = vmatpush1.msra.mxu0 %v415
  %565 = vmatprep.subr.mxu0 %v420
  %566 = vmatpush1.msra.mxu0 %v419
  %567 = vmatprep.subr.mxu0 %v424
  %568 = vmatpush1.msra.mxu0 %v423
  %569 = vmatprep.subr.mxu0 %v428
  %570 = vmatpush1.msra.mxu0 %v427
  %571 = vmatprep.subr.mxu0 %v432
  %572 = vmatpush1.msra.mxu0 %v431
  %573 = vmatprep.subr.mxu0 %v436
  %574 = vmatpush1.msra.mxu0 %v435
  %575 = vmatprep.subr.mxu0 %v440
  %576 = vmatpush1.msra.mxu0 %v439
  %577 = vmatprep.subr.mxu0 %v444
  %578 = vmatpush1.msra.mxu0 %v443
  %579 = vmatprep.subr.mxu0 %v448
  %580 = vmatpush1.msra.mxu0 %v447
  %581 = vmatprep.subr.mxu0 0.0
  %582 = vmatpush1.msra.mxu0 0.0
  %583 = vmatprep.subr.mxu0 0.0
  %584 = vmatpush1.msra.mxu0 0.0
  %585 = vmatprep.subr.mxu0 0.0
  %586 = vmatpush1.msra.mxu0 0.0
  %587 = vmatprep.subr.mxu0 0.0
  %588 = vmatpush1.msra.mxu0 0.0
  %589 = vmatprep.subr.mxu0 0.0
  %590 = vmatpush1.msra.mxu0 0.0
  %591 = vmatprep.subr.mxu0 0.0
  %592 = vmatpush1.msra.mxu0 0.0
  %593 = vmatprep.subr.mxu0 0.0
  %594 = vmatpush1.msra.mxu0 0.0
  %595 = vmatprep.subr.mxu0 0.0
  %596 = vmatpush1.msra.mxu0 0.0
  %597 = vmatprep.subr.mxu0 0.0
  %598 = vmatpush1.msra.mxu0 0.0
  %599 = vmatprep.subr.mxu0 0.0
  %600 = vmatpush1.msra.mxu0 0.0
  %601 = vmatprep.subr.mxu0 0.0
  %602 = vmatpush1.msra.mxu0 0.0
  %603 = vmatprep.subr.mxu0 0.0
  %604 = vmatpush1.msra.mxu0 0.0
  %605 = vmatprep.subr.mxu0 0.0
  %606 = vmatpush1.msra.mxu0 0.0
  %607 = vmatprep.subr.mxu0 0.0
  %608 = vmatpush1.msra.mxu0 0.0
  %609 = vmatprep.mubr.f32.mxu0 %v463
  %610 = vmatmul.mubr.f32.gmra.mrb[0].mxu0 %v373
  %v611 = vpop.f32.mrb[0].mxu0
  %v612 = vadd.f32 %v454, %v611
  %v613 = vpop.f32.mrb[0].mxu0
  %v614 = vadd.f32 %v454, %v613
  %615 = vmatprep.mubr.f32.mxu0 %v466
  %616 = vmatmul.mubr.f32.gmra.mrb[0].mxu0 %v375
  %v617 = vpop.f32.mrb[0].mxu0
  %v618 = vadd.f32 %v459, %v617
  %v619 = vpop.f32.mrb[0].mxu0
  %v620 = vadd.f32 %v459, %v619
  %621 = vdwg.mxu0
  %s622 = sld [smem:[#allocation4]]
  %vm623 = vcmp.ge.f32.partialorder %v535, 0.0
  %vm624 = vcmp.ge.f32.partialorder %v537, 0.0
  %vm625 = vcmp.ge.f32.partialorder %v612, 0.0
  %vm626 = vcmp.ge.f32.partialorder %v614, 0.0
  %vm627 = vcmp.ge.f32.partialorder %v541, 0.0
  %vm628 = vcmp.ge.f32.partialorder %v543, 0.0
  %vm629 = vcmp.ge.f32.partialorder %v618, 0.0
  %vm630 = vcmp.ge.f32.partialorder %v620, 0.0
  %v631 = vstv %s622
  %v632 = vmul.f32 %v631, %v535
  %v633 = vmul.f32 %v631, %v537
  %v634 = vmul.f32 %v631, %v612
  %v635 = vmul.f32 %v631, %v614
  %v636 = vmul.f32 %v631, %v541
  %v637 = vmul.f32 %v631, %v543
  %v638 = vmul.f32 %v631, %v618
  %v639 = vmul.f32 %v631, %v620
  %v640 = vsel %vm623, %v535, %v632
  %v641 = vsel %vm624, %v537, %v633
  %v642 = vsel %vm625, %v612, %v634
  %v643 = vsel %vm626, %v614, %v635
  %v644 = vsel %vm627, %v541, %v636
  %v645 = vsel %vm628, %v543, %v637
  %v646 = vsel %vm629, %v618, %v638
  %v647 = vsel %vm630, %v620, %v639
  %648 = vst [vmem:[#allocation3] sm:$0xff] %v640
  %649 = vst [vmem:[#allocation3 + $0x8] sm:$0xff] %v641
  %650 = vst [vmem:[#allocation3 + $0x10] sm:$0xff] %v642
  %651 = vst [vmem:[#allocation3 + $0x18] sm:$0xff] %v643
  %652 = vst [vmem:[#allocation3 + $0x20] sm:$0x3] %v644
  %653 = vst [vmem:[#allocation3 + $0x28] sm:$0x3] %v645
  %654 = vst [vmem:[#allocation3 + $0x30] sm:$0x3] %v646
  %655 = vst [vmem:[#allocation3 + $0x38] sm:$0x3] %v647
  %v656 = vld [vmem:[#allocation3] sm:$0xff]
  %v657 = vld [vmem:[#allocation3 + $0x20] sm:$0x3]
  %vm658 = vcmask 113664
  %659 = vst.msk [vmem:[%s4] sm:$0xff] %vm658, %v656
  %vm660 = vcmask 107520
  %661 = vst.msk [vmem:[%s4 + $0x10] sm:$0x3] %vm660, %v657
  %v662 = vld [vmem:[#allocation3] sm:$0xff]
  %v663 = vld [vmem:[#allocation3 + $0x20] sm:$0x3]
  %666 = vrot.lane.b32.xlu0 %v662, 126
  %v667 = vpop.permute.xlu0 %666
  %668 = vrot.lane.b32.xlu0 %v663, 126
  %v669 = vpop.permute.xlu0 %668
  %vm672 = vcmask 228464
  %673 = vst.msk [vmem:[%s4] sm:$0xff] %vm672, %v667
  %vm674 = vcmask 222320
  %675 = vst.msk [vmem:[%s4 + $0x10] sm:$0x3] %vm674, %v669
  %v676 = vld [vmem:[#allocation3] sm:$0xff]
  %v677 = vld [vmem:[#allocation3 + $0x20] sm:$0x3]
  %680 = vrot.lane.b32.xlu0 %v676, 124
  %v681 = vpop.permute.xlu0 %680
  %682 = vrot.lane.b32.xlu0 %v677, 124
  %v683 = vpop.permute.xlu0 %682
  %vm686 = vcmask 343264
  %687 = vst.msk [vmem:[%s4] sm:$0xff] %vm686, %v681
  %vm688 = vcmask 337120
  %689 = vst.msk [vmem:[%s4 + $0x10] sm:$0x3] %vm688, %v683
  %v690 = vld [vmem:[#allocation3] sm:$0xff]
  %v691 = vld [vmem:[#allocation3 + $0x20] sm:$0x3]
  %694 = vrot.lane.b32.xlu0 %v690, 122
  %v695 = vpop.permute.xlu0 %694
  %696 = vrot.lane.b32.xlu0 %v691, 122
  %v697 = vpop.permute.xlu0 %696
  %vm700 = vcmask 458064
  %701 = vst.msk [vmem:[%s4] sm:$0xff] %vm700, %v695
  %vm702 = vcmask 451920
  %703 = vst.msk [vmem:[%s4 + $0x10] sm:$0x3] %vm702, %v697
  %v704 = vld [vmem:[#allocation3] sm:$0xff]
  %v705 = vld [vmem:[#allocation3 + $0x20] sm:$0x3]
  %708 = vrot.lane.b32.xlu0 %v704, 120
  %v709 = vpop.permute.xlu0 %708
  %710 = vrot.lane.b32.xlu0 %v705, 120
  %v711 = vpop.permute.xlu0 %710
  %vm714 = vcmask 572864
  %715 = vst.msk [vmem:[%s4] sm:$0xff] %vm714, %v709
  %vm716 = vcmask 566720
  %717 = vst.msk [vmem:[%s4 + $0x10] sm:$0x3] %vm716, %v711
  %v718 = vld [vmem:[#allocation3] sm:$0xff]
  %v719 = vld [vmem:[#allocation3 + $0x20] sm:$0x3]
  %722 = vrot.lane.b32.xlu0 %v718, 118
  %v723 = vpop.permute.xlu0 %722
  %724 = vrot.lane.b32.xlu0 %v719, 118
  %v725 = vpop.permute.xlu0 %724
  %vm728 = vcmask 687664
  %729 = vst.msk [vmem:[%s4] sm:$0xff] %vm728, %v723
  %vm730 = vcmask 681520
  %731 = vst.msk [vmem:[%s4 + $0x10] sm:$0x3] %vm730, %v725
  %v732 = vld [vmem:[#allocation3] sm:$0xff]
  %v733 = vld [vmem:[#allocation3 + $0x20] sm:$0x3]
  %736 = vrot.lane.b32.xlu0 %v732, 116
  %v737 = vpop.permute.xlu0 %736
  %738 = vrot.lane.b32.xlu0 %v733, 116
  %v739 = vpop.permute.xlu0 %738
  %vm742 = vcmask 802464
  %743 = vst.msk [vmem:[%s4] sm:$0xff] %vm742, %v737
  %vm744 = vcmask 796320
  %745 = vst.msk [vmem:[%s4 + $0x10] sm:$0x3] %vm744, %v739
  %v746 = vld [vmem:[#allocation3] sm:$0xff]
  %v747 = vld [vmem:[#allocation3 + $0x20] sm:$0x3]
  %750 = vrot.lane.b32.xlu0 %v746, 114
  %v751 = vpop.permute.xlu0 %750
  %752 = vrot.lane.b32.xlu0 %v747, 114
  %v753 = vpop.permute.xlu0 %752
  %vm756 = vcmask 917264
  %757 = vst.msk [vmem:[%s4] sm:$0xff] %vm756, %v751
  %vm758 = vcmask 911120
  %759 = vst.msk [vmem:[%s4 + $0x10] sm:$0x3] %vm758, %v753
  %v760 = vld [vmem:[#allocation3 + $0x8] sm:$0xff]
  %v761 = vld [vmem:[#allocation3 + $0x28] sm:$0x3]
  %764 = vrot.lane.b32.xlu0 %v760, 112
  %v765 = vpop.permute.xlu0 %764
  %766 = vrot.lane.b32.xlu0 %v761, 112
  %v767 = vpop.permute.xlu0 %766
  %vm770 = vcmask 1032064
  %771 = vst.msk [vmem:[%s4] sm:$0xff] %vm770, %v765
  %vm772 = vcmask 1025920
  %773 = vst.msk [vmem:[%s4 + $0x10] sm:$0x3] %vm772, %v767
  %v774 = vld [vmem:[#allocation3 + $0x8] sm:$0xff]
  %v775 = vld [vmem:[#allocation3 + $0x28] sm:$0x3]
  %778 = vrot.lane.b32.xlu0 %v774, 110
  %v779 = vpop.permute.xlu0 %778
  %780 = vrot.lane.b32.xlu0 %v775, 110
  %v781 = vpop.permute.xlu0 %780
  %vm784 = vcmask 1048560
  %785 = vst.msk [vmem:[%s4] sm:$0xff] %vm784, %v779
  %vm786 = vcmask 97280
  %787 = vst.msk [vmem:[%s4 + $0x8] sm:$0xff] %vm786, %v779
  %vm788 = vcmask 1042416
  %789 = vst.msk [vmem:[%s4 + $0x10] sm:$0x3] %vm788, %v781
  %vm790 = vcmask 91136
  %791 = vst.msk [vmem:[%s4 + $0x18] sm:$0x3] %vm790, %v781
  %v792 = vld [vmem:[#allocation3 + $0x8] sm:$0xff]
  %v793 = vld [vmem:[#allocation3 + $0x28] sm:$0x3]
  %796 = vrot.lane.b32.xlu0 %v792, 108
  %v797 = vpop.permute.xlu0 %796
  %798 = vrot.lane.b32.xlu0 %v793, 108
  %v799 = vpop.permute.xlu0 %798
  %vm802 = vcmask 212064
  %803 = vst.msk [vmem:[%s4 + $0x8] sm:$0xff] %vm802, %v797
  %vm804 = vcmask 205920
  %805 = vst.msk [vmem:[%s4 + $0x18] sm:$0x3] %vm804, %v799
  %v806 = vld [vmem:[#allocation3 + $0x8] sm:$0xff]
  %v807 = vld [vmem:[#allocation3 + $0x28] sm:$0x3]
  %810 = vrot.lane.b32.xlu0 %v806, 106
  %v811 = vpop.permute.xlu0 %810
  %812 = vrot.lane.b32.xlu0 %v807, 106
  %v813 = vpop.permute.xlu0 %812
  %vm816 = vcmask 326864
  %817 = vst.msk [vmem:[%s4 + $0x8] sm:$0xff] %vm816, %v811
  %vm818 = vcmask 320720
  %819 = vst.msk [vmem:[%s4 + $0x18] sm:$0x3] %vm818, %v813
  %v820 = vld [vmem:[#allocation3 + $0x8] sm:$0xff]
  %v821 = vld [vmem:[#allocation3 + $0x28] sm:$0x3]
  %824 = vrot.lane.b32.xlu0 %v820, 104
  %v825 = vpop.permute.xlu0 %824
  %826 = vrot.lane.b32.xlu0 %v821, 104
  %v827 = vpop.permute.xlu0 %826
  %vm830 = vcmask 441664
  %831 = vst.msk [vmem:[%s4 + $0x8] sm:$0xff] %vm830, %v825
  %vm832 = vcmask 435520
  %833 = vst.msk [vmem:[%s4 + $0x18] sm:$0x3] %vm832, %v827
  %v834 = vld [vmem:[#allocation3 + $0x8] sm:$0xff]
  %v835 = vld [vmem:[#allocation3 + $0x28] sm:$0x3]
  %838 = vrot.lane.b32.xlu0 %v834, 102
  %v839 = vpop.permute.xlu0 %838
  %840 = vrot.lane.b32.xlu0 %v835, 102
  %v841 = vpop.permute.xlu0 %840
  %vm844 = vcmask 556464
  %845 = vst.msk [vmem:[%s4 + $0x8] sm:$0xff] %vm844, %v839
  %vm846 = vcmask 550320
  %847 = vst.msk [vmem:[%s4 + $0x18] sm:$0x3] %vm846, %v841
  %v848 = vld [vmem:[#allocation3 + $0x10] sm:$0xff]
  %v849 = vld [vmem:[#allocation3 + $0x30] sm:$0x3]
  %s850 = scalar_lea.vmem %s4, 32
  %851 = vst.msk [vmem:[%s850] sm:$0xff] %vm658, %v848
  %852 = vst.msk [vmem:[%s850 + $0x10] sm:$0x3] %vm660, %v849
  %v853 = vld [vmem:[#allocation3 + $0x10] sm:$0xff]
  %v854 = vld [vmem:[#allocation3 + $0x30] sm:$0x3]
  %857 = vrot.lane.b32.xlu0 %v853, 126
  %v858 = vpop.permute.xlu0 %857
  %859 = vrot.lane.b32.xlu0 %v854, 126
  %v860 = vpop.permute.xlu0 %859
  %863 = vst.msk [vmem:[%s850] sm:$0xff] %vm672, %v858
  %864 = vst.msk [vmem:[%s850 + $0x10] sm:$0x3] %vm674, %v860
  %v865 = vld [vmem:[#allocation3 + $0x10] sm:$0xff]
  %v866 = vld [vmem:[#allocation3 + $0x30] sm:$0x3]
  %869 = vrot.lane.b32.xlu0 %v865, 124
  %v870 = vpop.permute.xlu0 %869
  %871 = vrot.lane.b32.xlu0 %v866, 124
  %v872 = vpop.permute.xlu0 %871
  %875 = vst.msk [vmem:[%s850] sm:$0xff] %vm686, %v870
  %876 = vst.msk [vmem:[%s850 + $0x10] sm:$0x3] %vm688, %v872
  %v877 = vld [vmem:[#allocation3 + $0x10] sm:$0xff]
  %v878 = vld [vmem:[#allocation3 + $0x30] sm:$0x3]
  %881 = vrot.lane.b32.xlu0 %v877, 122
  %v882 = vpop.permute.xlu0 %881
  %883 = vrot.lane.b32.xlu0 %v878, 122
  %v884 = vpop.permute.xlu0 %883
  %887 = vst.msk [vmem:[%s850] sm:$0xff] %vm700, %v882
  %888 = vst.msk [vmem:[%s850 + $0x10] sm:$0x3] %vm702, %v884
  %v889 = vld [vmem:[#allocation3 + $0x10] sm:$0xff]
  %v890 = vld [vmem:[#allocation3 + $0x30] sm:$0x3]
  %893 = vrot.lane.b32.xlu0 %v889, 120
  %v894 = vpop.permute.xlu0 %893
  %895 = vrot.lane.b32.xlu0 %v890, 120
  %v896 = vpop.permute.xlu0 %895
  %899 = vst.msk [vmem:[%s850] sm:$0xff] %vm714, %v894
  %900 = vst.msk [vmem:[%s850 + $0x10] sm:$0x3] %vm716, %v896
  %v901 = vld [vmem:[#allocation3 + $0x10] sm:$0xff]
  %v902 = vld [vmem:[#allocation3 + $0x30] sm:$0x3]
  %905 = vrot.lane.b32.xlu0 %v901, 118
  %v906 = vpop.permute.xlu0 %905
  %907 = vrot.lane.b32.xlu0 %v902, 118
  %v908 = vpop.permute.xlu0 %907
  %911 = vst.msk [vmem:[%s850] sm:$0xff] %vm728, %v906
  %912 = vst.msk [vmem:[%s850 + $0x10] sm:$0x3] %vm730, %v908
  %v913 = vld [vmem:[#allocation3 + $0x10] sm:$0xff]
  %v914 = vld [vmem:[#allocation3 + $0x30] sm:$0x3]
  %917 = vrot.lane.b32.xlu0 %v913, 116
  %v918 = vpop.permute.xlu0 %917
  %919 = vrot.lane.b32.xlu0 %v914, 116
  %v920 = vpop.permute.xlu0 %919
  %923 = vst.msk [vmem:[%s850] sm:$0xff] %vm742, %v918
  %924 = vst.msk [vmem:[%s850 + $0x10] sm:$0x3] %vm744, %v920
  %v925 = vld [vmem:[#allocation3 + $0x10] sm:$0xff]
  %v926 = vld [vmem:[#allocation3 + $0x30] sm:$0x3]
  %929 = vrot.lane.b32.xlu0 %v925, 114
  %v930 = vpop.permute.xlu0 %929
  %931 = vrot.lane.b32.xlu0 %v926, 114
  %v932 = vpop.permute.xlu0 %931
  %935 = vst.msk [vmem:[%s850] sm:$0xff] %vm756, %v930
  %936 = vst.msk [vmem:[%s850 + $0x10] sm:$0x3] %vm758, %v932
  %v937 = vld [vmem:[#allocation3 + $0x18] sm:$0xff]
  %v938 = vld [vmem:[#allocation3 + $0x38] sm:$0x3]
  %941 = vrot.lane.b32.xlu0 %v937, 112
  %v942 = vpop.permute.xlu0 %941
  %943 = vrot.lane.b32.xlu0 %v938, 112
  %v944 = vpop.permute.xlu0 %943
  %947 = vst.msk [vmem:[%s850] sm:$0xff] %vm770, %v942
  %948 = vst.msk [vmem:[%s850 + $0x10] sm:$0x3] %vm772, %v944
  %v949 = vld [vmem:[#allocation3 + $0x18] sm:$0xff]
  %v950 = vld [vmem:[#allocation3 + $0x38] sm:$0x3]
  %953 = vrot.lane.b32.xlu0 %v949, 110
  %v954 = vpop.permute.xlu0 %953
  %955 = vrot.lane.b32.xlu0 %v950, 110
  %v956 = vpop.permute.xlu0 %955
  %959 = vst.msk [vmem:[%s850] sm:$0xff] %vm784, %v954
  %960 = vst.msk [vmem:[%s850 + $0x8] sm:$0xff] %vm786, %v954
  %961 = vst.msk [vmem:[%s850 + $0x10] sm:$0x3] %vm788, %v956
  %962 = vst.msk [vmem:[%s850 + $0x18] sm:$0x3] %vm790, %v956
  %v963 = vld [vmem:[#allocation3 + $0x18] sm:$0xff]
  %v964 = vld [vmem:[#allocation3 + $0x38] sm:$0x3]
  %967 = vrot.lane.b32.xlu0 %v963, 108
  %v968 = vpop.permute.xlu0 %967
  %969 = vrot.lane.b32.xlu0 %v964, 108
  %v970 = vpop.permute.xlu0 %969
  %973 = vst.msk [vmem:[%s850 + $0x8] sm:$0xff] %vm802, %v968
  %974 = vst.msk [vmem:[%s850 + $0x18] sm:$0x3] %vm804, %v970
  %v975 = vld [vmem:[#allocation3 + $0x18] sm:$0xff]
  %v976 = vld [vmem:[#allocation3 + $0x38] sm:$0x3]
  %979 = vrot.lane.b32.xlu0 %v975, 106
  %v980 = vpop.permute.xlu0 %979
  %981 = vrot.lane.b32.xlu0 %v976, 106
  %v982 = vpop.permute.xlu0 %981
  %985 = vst.msk [vmem:[%s850 + $0x8] sm:$0xff] %vm816, %v980
  %986 = vst.msk [vmem:[%s850 + $0x18] sm:$0x3] %vm818, %v982
  %v987 = vld [vmem:[#allocation3 + $0x18] sm:$0xff]
  %v988 = vld [vmem:[#allocation3 + $0x38] sm:$0x3]
  %991 = vrot.lane.b32.xlu0 %v987, 104
  %v992 = vpop.permute.xlu0 %991
  %993 = vrot.lane.b32.xlu0 %v988, 104
  %v994 = vpop.permute.xlu0 %993
  %997 = vst.msk [vmem:[%s850 + $0x8] sm:$0xff] %vm830, %v992
  %998 = vst.msk [vmem:[%s850 + $0x18] sm:$0x3] %vm832, %v994
  %v999 = vld [vmem:[#allocation3 + $0x18] sm:$0xff]
  %v1000 = vld [vmem:[#allocation3 + $0x38] sm:$0x3]
  %1003 = vrot.lane.b32.xlu0 %v999, 102
  %v1004 = vpop.permute.xlu0 %1003
  %1005 = vrot.lane.b32.xlu0 %v1000, 102
  %v1006 = vpop.permute.xlu0 %1005
  %1009 = vst.msk [vmem:[%s850 + $0x8] sm:$0xff] %vm844, %v1004
  %1010 = vst.msk [vmem:[%s850 + $0x18] sm:$0x3] %vm846, %v1006
  // Predicated region
  $region18: #{my_module_forward.1} parent=0 // pred_check
    _
  $region19: #{my_module_forward.1} parent=0 // pred_check_branch
    %1012 = sbr.rel (0) target = $region21
  $region20: #{my_module_forward.1} parent=0 // pred_region
    _
  $region21: #{my_module_forward.1} parent=0 // pred_fallthru
    _
  // Predicated region
  $region22: #{my_module_forward.1} parent=0 // pred_check
    _
  $region23: #{my_module_forward.1} parent=0 // pred_check_branch
    %1014 = sbr.rel (0) target = $region25
  $region24: #{my_module_forward.1} parent=0 // pred_region
    _
  $region25: #{my_module_forward.1} parent=0 // pred_fallthru
    _

</llo_original>
